<compile_context>
chip_gen: v5e
topology: v5e:2x2
jax: 0.10.0
libtpu: 0.0.40
codegen_flags: <defaults>
</compile_context>

<pallas_src>
import functools

import jax
import jax.numpy as jnp
from jax.experimental import pallas as pl
from jax.experimental.pallas import tpu as pltpu


def _round_up(x, m):
    return ((x + m - 1) // m) * m


def _pick_tile(n, max_tile):
    """Largest tile (multiple of 256, <= max_tile, >= 256) whose padding
    overhead stays below ~12.5% of n."""
    t = max_tile
    while t > 256 and (_round_up(n, t) - n) * 8 > n:
        t //= 2
    return t


def layer_kernel(a_ref, ae_ref, hs_ref, hd_ref, w_ref, o_ref,
                 acc_u_ref, acc_p_ref, *, deg_col, f_aug):
    """One (row-tile i, reduction-tile k) grid step.

    a_ref        : [TM, TK]   int8 0/1 adjacency tile (dest rows x src cols).
    ae_ref       : [TM, TK]   bf16 pre-masked A*E tile.
    hs_ref       : [TK, FA]   bf16 source features  [h | 1 | 0-pad].
    hd_ref       : [TM, FA]   bf16 dest features    [h | 1 | 0-pad].
    w_ref        : [3*FA, FO] f32 fused projection: Wl folded into Ws/Wn/Wu,
                   bias on the ones-row of the self block, zero filler rows.
    o_ref        : [TM, FO]   f32 lane-dense output tile (written at last k).
    acc_*_ref    : [TM, FA]   f32 VMEM accumulators (copy_u / u_mul_e paths).
    """
    k = pl.program_id(1)

    @pl.when(k == 0)
    def _init():
        acc_u_ref[...] = jnp.zeros_like(acc_u_ref)
        acc_p_ref[...] = jnp.zeros_like(acc_p_ref)

    hs = hs_ref[...]
    # copy_u path; int8 adjacency widened to bf16 right before the MXU push.
    # The ones-column of hs makes column `deg_col` the exact integer in-degree.
    a = a_ref[...].astype(jnp.bfloat16)
    acc_u_ref[...] += jnp.dot(a, hs, preferred_element_type=jnp.float32)
    # u_mul_e path; A*E arrives pre-masked in bf16 (no in-loop elementwise mul).
    acc_p_ref[...] += jnp.dot(ae_ref[...], hs,
                              preferred_element_type=jnp.float32)

    @pl.when(k == pl.num_programs(1) - 1)
    def _epilogue():
        au = acc_u_ref[...]
        ap = acc_p_ref[...]
        deg = au[:, deg_col:deg_col + 1]                    # exact integer degree
        # EUP reciprocal (approx): ~1e-3 rel err, far below bf16 quantization.
        inv_deg = jnp.where(deg > 0.0,
                            pl.reciprocal(deg, approx=True), 0.0)
        h_u = au * inv_deg     # extra/degree columns hit zero rows of w_ref
        h_p = ap * inv_deg
        h_s = hd_ref[...].astype(jnp.float32)
        # Three dots against static slices of the fused weight (avoids the
        # [TM, 3*FA] concat temporary); bias rides on the ones-column row of
        # the self block so no extra add is needed.
        out = jnp.dot(h_s, w_ref[0:f_aug, :],
                      preferred_element_type=jnp.float32)
        out += jnp.dot(h_p, w_ref[f_aug:2 * f_aug, :],
                       preferred_element_type=jnp.float32)
        out += jnp.dot(h_u, w_ref[2 * f_aug:3 * f_aug, :],
                       preferred_element_type=jnp.float32)
        o_ref[...] = out.astype(o_ref.dtype)


@functools.partial(jax.jit, static_argnames=("tm", "tk"))
def gnn_layer(A, E, h, params, *, tm=None, tk=None):
    """Forward pass of `Layer`.

    A: [N, N] dense adjacency (A[v,u]=1 iff edge u->v), E: [N, N] edge weights,
    h: [N, in_feat]. params holds PyTorch-convention Linear weights:
      Ws/Wn/Wu: [out_feat, in_feat], bs/bn/bu: [out_feat],
      Wl: [out_feat, out_feat], bl: [out_feat].
    """
    N, in_feat = h.shape
    out_feat = params["Ws"].shape[0]
    f32 = jnp.float32
    hi = jax.lax.Precision.HIGHEST

    # ---- Tile selection (clamped to avoid padding waste at small N) --------
    if tk is None:
        tk = _pick_tile(N, 1024)
    if tm is None:
        tm = _pick_tile(N, 512)
    n_m = _round_up(N, tm)                  # destination-row padding
    n_k = _round_up(N, tk)                  # source-node (reduction) padding
    # v7x megacore: keep >= 2 destination-row tiles so both TCs get work.
    if n_m // tm < 2 and tm > 256:
        tm //= 2
        n_m = _round_up(N, tm)

    f_aug = _round_up(in_feat + 1, 128)     # [h | 1 | 0-pad]  (full lane tiles)
    f_out_p = _round_up(out_feat, 128)      # lane-dense output stores
    deg_col = in_feat
    # Layout contract for the degree/bias trick: column `in_feat` of the
    # augmented features is the ones column; every w_full row in
    # [in_feat+1, f_aug) (and row in_feat of the Wn/Wu blocks) must stay zero.
    assert deg_col < f_aug and f_aug % 128 == 0 and f_out_p % 128 == 0

    # ---- One-time weight folding (plain XLA, outside the kernel) ----------
    # out = h @ (Wl@Ws).T + h_p @ (Wl@Wn).T + h_u @ (Wl@Wu).T
    #       + (bs+bn+bu) @ Wl.T + bl
    Wl, bl = params["Wl"], params["bl"]
    ws_f = jnp.dot(Wl, params["Ws"], precision=hi).T.astype(f32)   # [Fin, Fout]
    wn_f = jnp.dot(Wl, params["Wn"], precision=hi).T.astype(f32)
    wu_f = jnp.dot(Wl, params["Wu"], precision=hi).T.astype(f32)
    b_f = (jnp.dot(params["bs"] + params["bn"] + params["bu"], Wl.T,
                   precision=hi) + bl).astype(f32)                 # [Fout]

    # ---- Compact wire format for the dominant N x N streams ---------------
    # int8 A (1 B/edge) + pre-masked bf16 AE (2 B/edge); A*E is computed in f32
    # so bf16(A*E) == bf16(E) on edges (A is exactly 0/1) and 0 elsewhere.
    a_p = jnp.pad((A != 0).astype(jnp.int8), ((0, n_m - N), (0, n_k - N)))
    ae_p = jnp.pad((A * E).astype(jnp.bfloat16), ((0, n_m - N), (0, n_k - N)))

    h_aug = jnp.concatenate([h.astype(f32), jnp.ones((N, 1), f32)], axis=1)
    hs_p = jnp.pad(h_aug, ((0, n_k - N), (0, f_aug - (in_feat + 1)))
                   ).astype(jnp.bfloat16)                          # [n_k, FA]
    hd_p = jnp.pad(h_aug, ((0, n_m - N), (0, f_aug - (in_feat + 1)))
                   ).astype(jnp.bfloat16)                          # [n_m, FA]

    # Fused projection matrix for [h | h_p | h_u]; each block is f_aug wide.
    # The ones-column row of the self block carries the folded bias; all other
    # padding / degree-column rows are zero, so junk columns contribute 0.
    w_full = jnp.zeros((3 * f_aug, f_out_p), f32)
    w_full = w_full.at[0:in_feat, :out_feat].set(ws_f)
    w_full = w_full.at[in_feat, :out_feat].set(b_f)
    w_full = w_full.at[f_aug:f_aug + in_feat, :out_feat].set(wn_f)
    w_full = w_full.at[2 * f_aug:2 * f_aug + in_feat, :out_feat].set(wu_f)

    # ---- VMEM budget with headroom; capped for v7x's 64 MiB/TC -------------
    bytes_est = (
        2 * tm * tk * 1            # A int8, double-buffered
        + 2 * tm * tk * 2          # A*E bf16, double-buffered
        + 2 * tk * f_aug * 2       # source features
        + 2 * tm * f_aug * 2       # dest features
        + 2 * 3 * f_aug * f_out_p * 4
        + 2 * tm * f_out_p * 4     # output tile
        + 2 * tm * f_aug * 4       # two f32 accumulators
        + tm * f_out_p * 4         # epilogue temporaries
    )
    vmem_limit = min(48 * 1024 * 1024,
                     max(32 * 1024 * 1024, int(bytes_est * 1.25)))

    grid = (n_m // tm, n_k // tk)
    kernel = functools.partial(layer_kernel, deg_col=deg_col, f_aug=f_aug)

    out = pl.pallas_call(
        kernel,
        out_shape=jax.ShapeDtypeStruct((n_m, f_out_p), f32),
        grid_spec=pltpu.PrefetchScalarGridSpec(
            num_scalar_prefetch=0,
            grid=grid,
            in_specs=[
                pl.BlockSpec((tm, tk), lambda i, k: (i, k)),           # A tile
                pl.BlockSpec((tm, tk), lambda i, k: (i, k)),           # A*E
                pl.BlockSpec((tk, f_aug), lambda i, k: (k, 0)),        # src h
                pl.BlockSpec((tm, f_aug), lambda i, k: (i, 0)),        # dst h
                pl.BlockSpec((3 * f_aug, f_out_p), lambda i, k: (0, 0)),  # W
            ],
            out_specs=pl.BlockSpec((tm, f_out_p), lambda i, k: (i, 0)),
            scratch_shapes=[
                pltpu.VMEM((tm, f_aug), f32),   # copy_u accumulator (+ degree)
                pltpu.VMEM((tm, f_aug), f32),   # u_mul_e accumulator
            ],
        ),
        compiler_params=pltpu.CompilerParams(
            dimension_semantics=("parallel", "arbitrary"),
            vmem_limit_bytes=vmem_limit,
        ),
    )(a_p, ae_p, hs_p, hd_p, w_full)

    return out[:N, :out_feat]


def reference(A, E, h, params):
    """Pure-JAX reference matching the PyTorch/DGL module semantics."""
    deg = jnp.sum(A, axis=-1, keepdims=True)
    inv_deg = jnp.where(deg > 0.0, 1.0 / deg, 0.0)
    h_u = (A @ h) * inv_deg
    h_p = ((A * E) @ h) * inv_deg
    h_total = (h @ params["Ws"].T + params["bs"]
               + h_p @ params["Wn"].T + params["bn"]
               + h_u @ params["Wu"].T + params["bu"])
    return h_total @ params["Wl"].T + params["bl"]


if __name__ == "__main__":
    key = jax.random.PRNGKey(0)
    # Non-multiple-of-tile N exercises the padding + multi-tile grid paths
    # (grid is 2 x 2 with the adaptive tm=tk=256 picked for N=300).
    N, in_feat, out_feat = 300, 16, 32

    keys = jax.random.split(key, 12)
    A = (jax.random.uniform(keys[0], (N, N)) < 0.5).astype(jnp.float32)
    A = A.at[0].set(0.0)        # node 0 has no in-edges: exercises mean(∅)=0
    E = jax.random.normal(keys[1], (N, N), dtype=jnp.float32)
    h = jax.random.normal(keys[2], (N, in_feat), dtype=jnp.float32)

    def linear_init(kw, kb, fan_in, shape_w, shape_b):
        bound = 1.0 / jnp.sqrt(fan_in)
        W = jax.random.uniform(kw, shape_w, minval=-bound, maxval=bound,
                               dtype=jnp.float32)
        b = jax.random.uniform(kb, shape_b, minval=-bound, maxval=bound,
                               dtype=jnp.float32)
        return W, b

    Ws, bs = linear_init(keys[3], keys[4], in_feat, (out_feat, in_feat), (out_feat,))
    Wn, bn = linear_init(keys[5], keys[6], in_feat, (out_feat, in_feat), (out_feat,))
    Wu, bu = linear_init(keys[7], keys[8], in_feat, (out_feat, in_feat), (out_feat,))
    Wl, bl = linear_init(keys[9], keys[10], out_feat, (out_feat, out_feat), (out_feat,))
    params = dict(Ws=Ws, bs=bs, Wn=Wn, bn=bn, Wu=Wu, bu=bu, Wl=Wl, bl=bl)

    out = gnn_layer(A, E, h, params)
    jax.block_until_ready(out)
    assert out.shape == (N, out_feat)

    with jax.default_matmul_precision("float32"):
        # Tight structural check: same bf16-quantized inputs, unfused f32 math.
        q = lambda x: x.astype(jnp.bfloat16).astype(jnp.float32)
        ref_q = reference(q(A), q(E), q(h), params)
        # Loose end-to-end check vs the full-f32 module semantics.
        ref = reference(A, E, h, params)

    err_q = float(jnp.max(jnp.abs(out - ref_q)))
    assert jnp.allclose(out, ref_q, atol=1.5e-2, rtol=1.5e-2), \
        f"structural check failed, max|diff|={err_q}"

    err = float(jnp.max(jnp.abs(out - ref)))
    assert jnp.allclose(out, ref, atol=5e-2, rtol=5e-2), \
        f"end-to-end check failed, max|diff|={err}"

    print("KERNEL_OK")
</pallas_src>

<mosaic_0001>
module attributes {stable_mosaic.version = 11 : i64} {
  func.func @layer_kernel(%arg0: i32, %arg1: i32, %arg2: memref<256x256xi8, #tpu.memory_space<vmem>>, %arg3: memref<256x256xbf16, #tpu.memory_space<vmem>>, %arg4: memref<256x128xbf16, #tpu.memory_space<vmem>>, %arg5: memref<256x128xbf16, #tpu.memory_space<vmem>>, %arg6: memref<384x128xf32, #tpu.memory_space<vmem>>, %arg7: memref<256x128xf32, #tpu.memory_space<vmem>>, %arg8: memref<256x128xf32, #tpu.memory_space<vmem>>, %arg9: memref<256x128xf32, #tpu.memory_space<vmem>>) attributes {dimension_semantics = [#tpu.dimension_semantics<parallel>, #tpu.dimension_semantics<arbitrary>], iteration_bounds = array<i64: 2, 2>, scalar_prefetch = 0 : i64, scratch_operands = 2 : i64, tpu.core_type = #tpu.core_type<tc>, window_params = [{transform_indices = @transform_0, window_bounds = array<i64: 256, 256>}, {transform_indices = @transform_1, window_bounds = array<i64: 256, 256>}, {transform_indices = @transform_2, window_bounds = array<i64: 256, 128>}, {transform_indices = @transform_3, window_bounds = array<i64: 256, 128>}, {pipeline_mode = #tpu.pipeline_mode<synchronous>, transform_indices = @transform_4, window_bounds = array<i64: 384, 128>}, {transform_indices = @transform_5, window_bounds = array<i64: 256, 128>}]} {
    %c0_i32 = arith.constant 0 : i32
    %0 = arith.cmpi eq, %arg1, %c0_i32 : i32
    %1 = arith.extui %0 : i1 to i32
    %c0_i32_0 = arith.constant 0 : i32
    %2 = arith.cmpi ne, %1, %c0_i32_0 : i32
    scf.if %2 {
      %cst_16 = arith.constant 0.000000e+00 : f32
      %18 = vector.broadcast %cst_16 : f32 to vector<256x128xf32>
      %c0_17 = arith.constant 0 : index
      %c0_18 = arith.constant 0 : index
      %19 = vector.load %arg8[%c0_17, %c0_18] : memref<256x128xf32, #tpu.memory_space<vmem>>, vector<256x128xf32>
      tpu.vector_store %arg8[%c0_17, %c0_18], %18 {strides = array<i32>} : memref<256x128xf32, #tpu.memory_space<vmem>>, vector<256x128xf32>,
      %cst_19 = arith.constant 0.000000e+00 : f32
      %20 = vector.broadcast %cst_19 : f32 to vector<256x128xf32>
      %c0_20 = arith.constant 0 : index
      %c0_21 = arith.constant 0 : index
      %21 = vector.load %arg9[%c0_20, %c0_21] : memref<256x128xf32, #tpu.memory_space<vmem>>, vector<256x128xf32>
      tpu.vector_store %arg9[%c0_20, %c0_21], %20 {strides = array<i32>} : memref<256x128xf32, #tpu.memory_space<vmem>>, vector<256x128xf32>,
    } else {
    }
    %c0 = arith.constant 0 : index
    %c0_1 = arith.constant 0 : index
    %3 = vector.load %arg4[%c0, %c0_1] : memref<256x128xbf16, #tpu.memory_space<vmem>>, vector<256x128xbf16>
    %c0_2 = arith.constant 0 : index
    %c0_3 = arith.constant 0 : index
    %4 = vector.load %arg2[%c0_2, %c0_3] : memref<256x256xi8, #tpu.memory_space<vmem>>, vector<256x256xi8>
    %5 = arith.sitofp %4 : vector<256x256xi8> to vector<256x256xbf16>
    %c0_4 = arith.constant 0 : index
    %c0_5 = arith.constant 0 : index
    %6 = vector.load %arg8[%c0_4, %c0_5] : memref<256x128xf32, #tpu.memory_space<vmem>>, vector<256x128xf32>
    %cst = arith.constant dense<0.000000e+00> : vector<256x128xf32>
    %7 = tpu.matmul %5, %3, %cst {dimension_numbers = #tpu.dot_dimension_numbers<[1], [0], [0], [1], [0, 0, 1, 1], [], []>} : vector<256x256xbf16>, vector<256x128xbf16>, vector<256x128xf32> -> vector<256x128xf32>
    %8 = arith.addf %6, %7 : vector<256x128xf32>
    %c0_6 = arith.constant 0 : index
    %c0_7 = arith.constant 0 : index
    %9 = vector.load %arg8[%c0_6, %c0_7] : memref<256x128xf32, #tpu.memory_space<vmem>>, vector<256x128xf32>
    tpu.vector_store %arg8[%c0_6, %c0_7], %8 {strides = array<i32>} : memref<256x128xf32, #tpu.memory_space<vmem>>, vector<256x128xf32>,
    %c0_8 = arith.constant 0 : index
    %c0_9 = arith.constant 0 : index
    %10 = vector.load %arg9[%c0_8, %c0_9] : memref<256x128xf32, #tpu.memory_space<vmem>>, vector<256x128xf32>
    %c0_10 = arith.constant 0 : index
    %c0_11 = arith.constant 0 : index
    %11 = vector.load %arg3[%c0_10, %c0_11] : memref<256x256xbf16, #tpu.memory_space<vmem>>, vector<256x256xbf16>
    %cst_12 = arith.constant dense<0.000000e+00> : vector<256x128xf32>
    %12 = tpu.matmul %11, %3, %cst_12 {dimension_numbers = #tpu.dot_dimension_numbers<[1], [0], [0], [1], [0, 0, 1, 1], [], []>} : vector<256x256xbf16>, vector<256x128xbf16>, vector<256x128xf32> -> vector<256x128xf32>
    %13 = arith.addf %10, %12 : vector<256x128xf32>
    %c0_13 = arith.constant 0 : index
    %c0_14 = arith.constant 0 : index
    %14 = vector.load %arg9[%c0_13, %c0_14] : memref<256x128xf32, #tpu.memory_space<vmem>>, vector<256x128xf32>
    tpu.vector_store %arg9[%c0_13, %c0_14], %13 {strides = array<i32>} : memref<256x128xf32, #tpu.memory_space<vmem>>, vector<256x128xf32>,
    %c1_i32 = arith.constant 1 : i32
    %15 = arith.cmpi eq, %arg1, %c1_i32 : i32
    %16 = arith.extui %15 : i1 to i32
    %c0_i32_15 = arith.constant 0 : i32
    %17 = arith.cmpi ne, %16, %c0_i32_15 : i32
    scf.if %17 {
      %c0_16 = arith.constant 0 : index
      %c0_17 = arith.constant 0 : index
      %18 = vector.load %arg8[%c0_16, %c0_17] : memref<256x128xf32, #tpu.memory_space<vmem>>, vector<256x128xf32>
      %c0_18 = arith.constant 0 : index
      %c0_19 = arith.constant 0 : index
      %19 = vector.load %arg9[%c0_18, %c0_19] : memref<256x128xf32, #tpu.memory_space<vmem>>, vector<256x128xf32>
      %20 = vector.extract_strided_slice %18 {offsets = [0, 16], sizes = [256, 1], strides = [1, 1]} : vector<256x128xf32> to vector<256x1xf32>
      %cst_20 = arith.constant 0.000000e+00 : f32
      %21 = vector.broadcast %cst_20 : f32 to vector<256x1xf32>
      %22 = arith.cmpf ogt, %20, %21 : vector<256x1xf32>
      %23 = tpu.reciprocal %20 {approx = true} : vector<256x1xf32> -> vector<256x1xf32>
      %cst_21 = arith.constant 0.000000e+00 : f32
      %24 = vector.broadcast %cst_21 : f32 to vector<256x1xf32>
      %25 = arith.select %22, %23, %24 : vector<256x1xi1>, vector<256x1xf32>
      %26 = vector.broadcast %25 : vector<256x1xf32> to vector<256x128xf32>
      %27 = arith.mulf %18, %26 : vector<256x128xf32>
      %28 = vector.broadcast %25 : vector<256x1xf32> to vector<256x128xf32>
      %29 = arith.mulf %19, %28 : vector<256x128xf32>
      %c0_22 = arith.constant 0 : index
      %c0_23 = arith.constant 0 : index
      %30 = vector.load %arg5[%c0_22, %c0_23] : memref<256x128xbf16, #tpu.memory_space<vmem>>, vector<256x128xbf16>
      %31 = arith.extf %30 : vector<256x128xbf16> to vector<256x128xf32>
      %c0_24 = arith.constant 0 : index
      %c0_25 = arith.constant 0 : index
      %32 = vector.load %arg6[%c0_24, %c0_25] : memref<384x128xf32, #tpu.memory_space<vmem>>, vector<128x128xf32>
      %cst_26 = arith.constant dense<0.000000e+00> : vector<256x128xf32>
      %33 = tpu.matmul %31, %32, %cst_26 {dimension_numbers = #tpu.dot_dimension_numbers<[1], [0], [0], [1], [0, 0, 1, 1], [], []>} : vector<256x128xf32>, vector<128x128xf32>, vector<256x128xf32> -> vector<256x128xf32>
      %c128 = arith.constant 128 : index
      %c0_27 = arith.constant 0 : index
      %34 = vector.load %arg6[%c128, %c0_27] : memref<384x128xf32, #tpu.memory_space<vmem>>, vector<128x128xf32>
      %cst_28 = arith.constant dense<0.000000e+00> : vector<256x128xf32>
      %35 = tpu.matmul %29, %34, %cst_28 {dimension_numbers = #tpu.dot_dimension_numbers<[1], [0], [0], [1], [0, 0, 1, 1], [], []>} : vector<256x128xf32>, vector<128x128xf32>, vector<256x128xf32> -> vector<256x128xf32>
      %36 = arith.addf %33, %35 : vector<256x128xf32>
      %c256 = arith.constant 256 : index
      %c0_29 = arith.constant 0 : index
      %37 = vector.load %arg6[%c256, %c0_29] : memref<384x128xf32, #tpu.memory_space<vmem>>, vector<128x128xf32>
      %cst_30 = arith.constant dense<0.000000e+00> : vector<256x128xf32>
      %38 = tpu.matmul %27, %37, %cst_30 {dimension_numbers = #tpu.dot_dimension_numbers<[1], [0], [0], [1], [0, 0, 1, 1], [], []>} : vector<256x128xf32>, vector<128x128xf32>, vector<256x128xf32> -> vector<256x128xf32>
      %39 = arith.addf %36, %38 : vector<256x128xf32>
      %c0_31 = arith.constant 0 : index
      %c0_32 = arith.constant 0 : index
      %40 = vector.load %arg7[%c0_31, %c0_32] : memref<256x128xf32, #tpu.memory_space<vmem>>, vector<256x128xf32>
      tpu.vector_store %arg7[%c0_31, %c0_32], %39 {strides = array<i32>} : memref<256x128xf32, #tpu.memory_space<vmem>>, vector<256x128xf32>,
    } else {
    }
    return
  }
  func.func @transform_0(%arg0: i32, %arg1: i32) -> (i32, i32) {
    %c0_i32 = arith.constant 0 : i32
    return %arg0, %arg1 : i32, i32
  }
  func.func @transform_1(%arg0: i32, %arg1: i32) -> (i32, i32) {
    %c0_i32 = arith.constant 0 : i32
    return %arg0, %arg1 : i32, i32
  }
  func.func @transform_2(%arg0: i32, %arg1: i32) -> (i32, i32) {
    %c0_i32 = arith.constant 0 : i32
    %c0_i32_0 = arith.constant 0 : i32
    return %arg1, %c0_i32 : i32, i32
  }
  func.func @transform_3(%arg0: i32, %arg1: i32) -> (i32, i32) {
    %c0_i32 = arith.constant 0 : i32
    %c0_i32_0 = arith.constant 0 : i32
    return %arg0, %c0_i32 : i32, i32
  }
  func.func @transform_4(%arg0: i32, %arg1: i32) -> (i32, i32) {
    %c0_i32 = arith.constant 0 : i32
    %c0_i32_0 = arith.constant 0 : i32
    %c0_i32_1 = arith.constant 0 : i32
    return %c0_i32, %c0_i32_0 : i32, i32
  }
  func.func @transform_5(%arg0: i32, %arg1: i32) -> (i32, i32) {
    %c0_i32 = arith.constant 0 : i32
    %c0_i32_0 = arith.constant 0 : i32
    return %arg0, %c0_i32 : i32, i32
  }
}

</mosaic_0001>

<llo_original>
// kernel: gnn_layer.1
$region0: #{gnn_layer.1}
  #allocation0 [shape = 'u32[]', space=smem, size = 0x4, offset = 0x4, fixed_abs, tag = 'smem constant byte address 0x4 - core index']
  #allocation1 [shape = 'u32[72,128]{1,0:T(1,128)}', space=vmem, size = 0x9000, scoped, tag = 'internal scratch']
  #allocation2 [shape = 'f32[256,128]{1,0:T(8,128)}', space=vmem, size = 0x20000, scoped, tag = 'scratch operand']
  #allocation3 [shape = 'f32[256,128]{1,0:T(8,128)}', space=vmem, size = 0x20000, scoped, tag = 'scratch operand']
  %s0 = inlined_call_operand.vmem [shape: s8[512,512], index: 0, kind: input, shape index: {}]
  %s1 = inlined_call_operand.vmem [shape: bf16[512,512], index: 1, kind: input, shape index: {}]
  %s2 = inlined_call_operand.vmem [shape: bf16[512,128], index: 2, kind: input, shape index: {}, may-alias: {2,3}]
  %s3 = inlined_call_operand.vmem [shape: bf16[512,128], index: 3, kind: input, shape index: {}, may-alias: {2,3}]
  %s4 = inlined_call_operand.vmem [shape: f32[384,128], index: 4, kind: input, shape index: {}]
  %s5 = inlined_call_operand.vmem [shape: f32[512,128], index: 5, kind: output, shape index: {}]
  %s6 = sld [smem:[#allocation0]]
  $region122: #{gnn_layer.1} parent=0
    _
  %s8 = ssub.s32 1, %s6
  %s9 = scalar_select 0, %s8, %s6
  $region1: #{gnn_layer.1} parent=0
    #allocation4 [shape = 'u8[131072]{0}', space=vmem, size = 0x20000, scoped, tag = 'input window, operand 0']
    #allocation5 [shape = 'u8[262144]{0}', space=vmem, size = 0x40000, scoped, tag = 'input window, operand 1']
    loop: start=0, step=1, limit=6
    $region2: #{gnn_layer.1} parent=1 // loop_pre_header
      _
    $region3: #{gnn_layer.1} parent=1 // loop_header
      %s11 = sphi 0, %s15
      %p12 = scmp.ge.s32.totalorder %s11, 6
      %s18 = sphi 0, %s30
      %s19 = sphi 0, %s26
      %s20 = sphi 0, %s18
      %s21 = sphi 0, %s19
      %s22 = sphi 0, %s20
      %s23 = sphi 0, %s21
      %s35 = sphi 0, %s37
      %s38 = sphi 0, %s35
      %s39 = sphi 0, %s38
      %s55 = sphi 0, %s39
      %s63 = sphi 0, %s65
      %s66 = sphi 0, %s63
      %s67 = sphi 0, %s66
      %s83 = sphi 0, %s67
      %s89 = sphi 0, %s91
      %s92 = sphi 0, %s89
      %s93 = sphi 0, %s92
      %s109 = sphi 0, %s93
      %s115 = sphi 0, %s117
      %s118 = sphi 0, %s115
      %s119 = sphi 0, %s118
      %s135 = sphi 0, %s119
      %s139 = sphi 0, %s139
      %s141 = sphi 0, %s139
      %s142 = sphi 0, %s141
      %s156 = sphi 0, %s142
      %s162 = sphi 0, %s164
      %s165 = sphi 0, %s162
      %s166 = sphi 0, %s165
      %s182 = sphi 0, %s166
    $region4: #{gnn_layer.1} parent=1 // loop_header_branch
      %14 = sbr.rel (%p12) target = $region8
    $region5: #{gnn_layer.1} parent=1 // loop_body
      %s16 = ssub.s32 %s11, 1
      %s17 = ssub.s32 %s11, 2
      %s24 = sadd.s32 1, %s19
      %p25 = scmp.ge.s32.totalorder %s24, 2
      %s26 = scalar_select %p25, 0, %s24
      %s27 = sadd.s32 1, %s18
      %s28 = scalar_select %p25, %s27, %s18
      %p29 = scmp.ge.s32.totalorder %s28, 2
      %s30 = scalar_select %p29, 0, %s28
      %s31 = ssub.s32 %s18, %s30
      %s32 = ssub.s32 %s19, %s26
      %s33 = sor.u32 %s31, %s32
      %p34 = scmp.eq.s32.totalorder %s33, 0
      %s36 = sadd.s32 %s35, 1
      %s37 = scalar_select %p34, %s35, %s36
      %p40 = pneg %p34
      %p41 = scmp.eq.s32.totalorder %s11, 3
      %p42 = por %p40, %p41
      %p43 = scmp.ne.s32.totalorder %s35, %s38
      %p44 = scmp.eq.s32.totalorder %s11, 0
      %p45 = por %p43, %p44
      %p46 = scmp.ne.s32.totalorder %s35, %s38
      %p47 = scmp.eq.s32.totalorder %s16, 3
      %p48 = por %p46, %p47
      %p49 = scmp.ne.s32.totalorder %s38, %s39
      %p50 = scmp.eq.s32.totalorder %s16, 0
      %p51 = por %p49, %p50
      %p52 = scmp.ne.s32.totalorder %s38, %s39
      %p53 = scmp.eq.s32.totalorder %s17, 3
      %p54 = por %p52, %p53
      %p56 = scmp.ne.s32.totalorder %s39, %s55
      %p57 = scmp.eq.s32.totalorder %s17, 0
      %p58 = por %p56, %p57
      %s59 = ssub.s32 %s18, %s30
      %s60 = ssub.s32 %s19, %s26
      %s61 = sor.u32 %s59, %s60
      %p62 = scmp.eq.s32.totalorder %s61, 0
      %s64 = sadd.s32 %s63, 1
      %s65 = scalar_select %p62, %s63, %s64
      %p68 = pneg %p62
      %p69 = scmp.eq.s32.totalorder %s11, 3
      %p70 = por %p68, %p69
      %p71 = scmp.ne.s32.totalorder %s63, %s66
      %p72 = scmp.eq.s32.totalorder %s11, 0
      %p73 = por %p71, %p72
      %p74 = scmp.ne.s32.totalorder %s63, %s66
      %p75 = scmp.eq.s32.totalorder %s16, 3
      %p76 = por %p74, %p75
      %p77 = scmp.ne.s32.totalorder %s66, %s67
      %p78 = scmp.eq.s32.totalorder %s16, 0
      %p79 = por %p77, %p78
      %p80 = scmp.ne.s32.totalorder %s66, %s67
      %p81 = scmp.eq.s32.totalorder %s17, 3
      %p82 = por %p80, %p81
      %p84 = scmp.ne.s32.totalorder %s67, %s83
      %p85 = scmp.eq.s32.totalorder %s17, 0
      %p86 = por %p84, %p85
      %s87 = ssub.s32 %s19, %s26
      %p88 = scmp.eq.s32.totalorder %s87, 0
      %s90 = sadd.s32 %s89, 1
      %s91 = scalar_select %p88, %s89, %s90
      %p94 = pneg %p88
      %p95 = scmp.eq.s32.totalorder %s11, 3
      %p96 = por %p94, %p95
      %p97 = scmp.ne.s32.totalorder %s89, %s92
      %p98 = scmp.eq.s32.totalorder %s11, 0
      %p99 = por %p97, %p98
      %p100 = scmp.ne.s32.totalorder %s89, %s92
      %p101 = scmp.eq.s32.totalorder %s16, 3
      %p102 = por %p100, %p101
      %p103 = scmp.ne.s32.totalorder %s92, %s93
      %p104 = scmp.eq.s32.totalorder %s16, 0
      %p105 = por %p103, %p104
      %p106 = scmp.ne.s32.totalorder %s92, %s93
      %p107 = scmp.eq.s32.totalorder %s17, 3
      %p108 = por %p106, %p107
      %p110 = scmp.ne.s32.totalorder %s93, %s109
      %p111 = scmp.eq.s32.totalorder %s17, 0
      %p112 = por %p110, %p111
      %s113 = ssub.s32 %s18, %s30
      %p114 = scmp.eq.s32.totalorder %s113, 0
      %s116 = sadd.s32 %s115, 1
      %s117 = scalar_select %p114, %s115, %s116
      %p120 = pneg %p114
      %p121 = scmp.eq.s32.totalorder %s11, 3
      %p122 = por %p120, %p121
      %p123 = scmp.ne.s32.totalorder %s115, %s118
      %p124 = scmp.eq.s32.totalorder %s11, 0
      %p125 = por %p123, %p124
      %p126 = scmp.ne.s32.totalorder %s115, %s118
      %p127 = scmp.eq.s32.totalorder %s16, 3
      %p128 = por %p126, %p127
      %p129 = scmp.ne.s32.totalorder %s118, %s119
      %p130 = scmp.eq.s32.totalorder %s16, 0
      %p131 = por %p129, %p130
      %p132 = scmp.ne.s32.totalorder %s118, %s119
      %p133 = scmp.eq.s32.totalorder %s17, 3
      %p134 = por %p132, %p133
      %p136 = scmp.ne.s32.totalorder %s119, %s135
      %p137 = scmp.eq.s32.totalorder %s17, 0
      %p138 = por %p136, %p137
      %s140 = sadd.s32 %s139, 1
      %p143 = scmp.eq.s32.totalorder %s11, 3
      %p144 = scmp.ne.s32.totalorder %s139, %s141
      %p145 = scmp.eq.s32.totalorder %s11, 0
      %p146 = por %p144, %p145
      %p147 = scmp.ne.s32.totalorder %s139, %s141
      %p148 = scmp.eq.s32.totalorder %s16, 3
      %p149 = por %p147, %p148
      %p150 = scmp.ne.s32.totalorder %s141, %s142
      %p151 = scmp.eq.s32.totalorder %s16, 0
      %p152 = por %p150, %p151
      %p153 = scmp.ne.s32.totalorder %s141, %s142
      %p154 = scmp.eq.s32.totalorder %s17, 3
      %p155 = por %p153, %p154
      %p157 = scmp.ne.s32.totalorder %s142, %s156
      %p158 = scmp.eq.s32.totalorder %s17, 0
      %p159 = por %p157, %p158
      %s160 = ssub.s32 %s18, %s30
      %p161 = scmp.eq.s32.totalorder %s160, 0
      %s163 = sadd.s32 %s162, 1
      %s164 = scalar_select %p161, %s162, %s163
      %p167 = pneg %p161
      %p168 = scmp.eq.s32.totalorder %s11, 3
      %p169 = por %p167, %p168
      %p170 = scmp.ne.s32.totalorder %s162, %s165
      %p171 = scmp.eq.s32.totalorder %s11, 0
      %p172 = por %p170, %p171
      %p173 = scmp.ne.s32.totalorder %s162, %s165
      %p174 = scmp.eq.s32.totalorder %s16, 3
      %p175 = por %p173, %p174
      %p176 = scmp.ne.s32.totalorder %s165, %s166
      %p177 = scmp.eq.s32.totalorder %s16, 0
      %p178 = por %p176, %p177
      %p179 = scmp.ne.s32.totalorder %s165, %s166
      %p180 = scmp.eq.s32.totalorder %s17, 3
      %p181 = por %p179, %p180
      %p183 = scmp.ne.s32.totalorder %s166, %s182
      %p184 = scmp.eq.s32.totalorder %s17, 0
      %p185 = por %p183, %p184
      %p186 = scmp.le.s32.totalorder 1, %s11
      %p187 = scmp.lt.s32.totalorder %s11, 5
      %p188 = pnand %p186, %p187
      %p189 = pneg %p188
      // Predicated region
      $region9: #{gnn_layer.1} parent=5 // pred_check
        _
      $region10: #{gnn_layer.1} parent=5 // pred_check_branch
        %191 = sbr.rel (%p188) target = $region12
      $region11: #{gnn_layer.1} parent=5 // pred_region
        %s192 = ssub.s32 %s11, 1
        // Predicated region
        $region13: #{gnn_layer.1} parent=11 // pred_check
          %p193 = pneg %p152
        $region14: #{gnn_layer.1} parent=11 // pred_check_branch
          %195 = sbr.rel (%p193) target = $region16
        $region15: #{gnn_layer.1} parent=11 // pred_region
          _
        $region16: #{gnn_layer.1} parent=11 // pred_fallthru
          _
      $region12: #{gnn_layer.1} parent=5 // pred_fallthru
        _
      %p196 = scmp.lt.s32.totalorder %s11, 4
      // Predicated region
      $region17: #{gnn_layer.1} parent=5 // pred_check
        %p197 = pneg %p196
      $region18: #{gnn_layer.1} parent=5 // pred_check_branch
        %199 = sbr.rel (%p197) target = $region20
      $region19: #{gnn_layer.1} parent=5 // pred_region
        // Predicated region
        $region21: #{gnn_layer.1} parent=19 // pred_check
          %p200 = pneg %p45
        $region22: #{gnn_layer.1} parent=19 // pred_check_branch
          %202 = sbr.rel (%p200) target = $region24
        $region23: #{gnn_layer.1} parent=19 // pred_region
          %s203 = sand.u32 %s35, 1
          %s204 = sand.u32 %s35, 1
          %s205 = smul.addr %s204, 128
          %s206 = scalar_lea.vmem [#allocation4], %s205
          %s207 = smul.u32 8, %s18
          %s208 = smul.u32 2, %s19
          %s209 = smul.addr %s207, 4
          %s210 = sadd.s32 %s208, %s209
          %s211 = smul.addr %s210, 8
          %s212 = scalar_lea.vmem %s0, %s211
          // Predicated region
          $region25: #{gnn_layer.1} parent=23 // pred_check
            _
          $region26: #{gnn_layer.1} parent=23 // pred_check_branch
            %214 = sbr.rel (0) target = $region28
          $region27: #{gnn_layer.1} parent=23 // pred_region
            // Predicated region
            $region29: #{gnn_layer.1} parent=27 // pred_check
              _
            $region30: #{gnn_layer.1} parent=27 // pred_check_branch
              %216 = sbr.rel (0) target = $region32
            $region31: #{gnn_layer.1} parent=27 // pred_region
              loop: start=0, step=1, limit=1
              $region33: #{gnn_layer.1} parent=31 // loop_pre_header
                _
              $region34: #{gnn_layer.1} parent=31 // loop_header
                %s218 = sphi 0, %s222
                %p219 = scmp.ge.s32.totalorder %s218, 1
                %s223 = sphi %s212, %s212
                %s224 = sphi %s206, %s206
              $region35: #{gnn_layer.1} parent=31 // loop_header_branch
                %221 = sbr.rel (%p219) target = $region39
              $region36: #{gnn_layer.1} parent=31 // loop_body
                %v225 = vld [vmem:[%s223] sm:$0xff]
                %226 = vst [vmem:[%s224] sm:$0xff] %v225
                %v227 = vld [vmem:[%s223 + $0x8] sm:$0xff]
                %228 = vst [vmem:[%s224 + $0x8] sm:$0xff] %v227
                %v229 = vld [vmem:[%s223 + $0x20] sm:$0xff]
                %230 = vst [vmem:[%s224 + $0x10] sm:$0xff] %v229
                %v231 = vld [vmem:[%s223 + $0x28] sm:$0xff]
                %232 = vst [vmem:[%s224 + $0x18] sm:$0xff] %v231
                %v233 = vld [vmem:[%s223 + $0x40] sm:$0xff]
                %234 = vst [vmem:[%s224 + $0x20] sm:$0xff] %v233
                %v235 = vld [vmem:[%s223 + $0x48] sm:$0xff]
                %236 = vst [vmem:[%s224 + $0x28] sm:$0xff] %v235
                %v237 = vld [vmem:[%s223 + $0x60] sm:$0xff]
                %238 = vst [vmem:[%s224 + $0x30] sm:$0xff] %v237
                %v239 = vld [vmem:[%s223 + $0x68] sm:$0xff]
                %240 = vst [vmem:[%s224 + $0x38] sm:$0xff] %v239
                %v241 = vld [vmem:[%s223 + $0x80] sm:$0xff]
                %242 = vst [vmem:[%s224 + $0x40] sm:$0xff] %v241
                %v243 = vld [vmem:[%s223 + $0x88] sm:$0xff]
                %244 = vst [vmem:[%s224 + $0x48] sm:$0xff] %v243
                %v245 = vld [vmem:[%s223 + $0xa0] sm:$0xff]
                %246 = vst [vmem:[%s224 + $0x50] sm:$0xff] %v245
                %v247 = vld [vmem:[%s223 + $0xa8] sm:$0xff]
                %248 = vst [vmem:[%s224 + $0x58] sm:$0xff] %v247
                %v249 = vld [vmem:[%s223 + $0xc0] sm:$0xff]
                %250 = vst [vmem:[%s224 + $0x60] sm:$0xff] %v249
                %v251 = vld [vmem:[%s223 + $0xc8] sm:$0xff]
                %252 = vst [vmem:[%s224 + $0x68] sm:$0xff] %v251
                %v253 = vld [vmem:[%s223 + $0xe0] sm:$0xff]
                %254 = vst [vmem:[%s224 + $0x70] sm:$0xff] %v253
                %v255 = vld [vmem:[%s223 + $0xe8] sm:$0xff]
                %256 = vst [vmem:[%s224 + $0x78] sm:$0xff] %v255
              $region37: #{gnn_layer.1} parent=31 // loop_footer
                %s222 = sadd.s32 1, %s218
              $region38: #{gnn_layer.1} parent=31 // loop_footer_branch
                %217 = sbr.rel target = $region34
              $region39: #{gnn_layer.1} parent=31 // loop_exit
                _
            $region32: #{gnn_layer.1} parent=27 // pred_fallthru
              _
            // Predicated region
            $region40: #{gnn_layer.1} parent=27 // pred_check
              _
            $region41: #{gnn_layer.1} parent=27 // pred_check_branch
              %258 = sbr.rel target = $region43
            $region42: #{gnn_layer.1} parent=27 // pred_region
              _
            $region43: #{gnn_layer.1} parent=27 // pred_fallthru
              _
          $region28: #{gnn_layer.1} parent=23 // pred_fallthru
            _
          %259 = vnop
        $region24: #{gnn_layer.1} parent=19 // pred_fallthru
          _
        // Predicated region
        $region44: #{gnn_layer.1} parent=19 // pred_check
          %p260 = pneg %p73
        $region45: #{gnn_layer.1} parent=19 // pred_check_branch
          %262 = sbr.rel (%p260) target = $region47
        $region46: #{gnn_layer.1} parent=19 // pred_region
          %s263 = sand.u32 %s63, 1
          %s264 = sand.u32 %s63, 1
          %s265 = smul.addr %s264, 256
          %s266 = scalar_lea.vmem [#allocation5], %s265
          %s267 = smul.u32 32, %s18
          %s268 = smul.u32 2, %s19
          %s269 = smul.addr %s267, 4
          %s270 = sadd.s32 %s268, %s269
          %s271 = smul.addr %s270, 4
          %s272 = scalar_lea.vmem %s1, %s271
          // Predicated region
          $region48: #{gnn_layer.1} parent=46 // pred_check
            _
          $region49: #{gnn_layer.1} parent=46 // pred_check_branch
            %274 = sbr.rel (0) target = $region51
          $region50: #{gnn_layer.1} parent=46 // pred_region
            // Predicated region
            $region52: #{gnn_layer.1} parent=50 // pred_check
              _
            $region53: #{gnn_layer.1} parent=50 // pred_check_branch
              %276 = sbr.rel (0) target = $region55
            $region54: #{gnn_layer.1} parent=50 // pred_region
              // Predicated region
              $region67: #{gnn_layer.1} parent=54 // pred_check
                _
              $region68: #{gnn_layer.1} parent=54 // pred_check_branch
                %354 = sbr.rel (0) target = $region70
              $region69: #{gnn_layer.1} parent=54 // pred_region
                loop: start=0, step=1, limit=1
                $region71: #{gnn_layer.1} parent=69 // loop_pre_header
                  _
                $region72: #{gnn_layer.1} parent=69 // loop_header
                  %s356 = sphi 0, %s360
                  %p357 = scmp.ge.s32.totalorder %s356, 1
                  %s361 = sphi %s272, %s272
                  %s362 = sphi %s266, %s266
                $region73: #{gnn_layer.1} parent=69 // loop_header_branch
                  %359 = sbr.rel (%p357) target = $region77
                $region74: #{gnn_layer.1} parent=69 // loop_body
                  %v363 = vld [vmem:[%s361] sm:$0xff]
                  %364 = vst [vmem:[%s362] sm:$0xff] %v363
                  %v365 = vld [vmem:[%s361 + $0x10] sm:$0xff]
                  %366 = vst [vmem:[%s362 + $0x8] sm:$0xff] %v365
                  %v367 = vld [vmem:[%s361 + $0x20] sm:$0xff]
                  %368 = vst [vmem:[%s362 + $0x10] sm:$0xff] %v367
                  %v369 = vld [vmem:[%s361 + $0x30] sm:$0xff]
                  %370 = vst [vmem:[%s362 + $0x18] sm:$0xff] %v369
                  %v371 = vld [vmem:[%s361 + $0x40] sm:$0xff]
                  %372 = vst [vmem:[%s362 + $0x20] sm:$0xff] %v371
                  %v373 = vld [vmem:[%s361 + $0x50] sm:$0xff]
                  %374 = vst [vmem:[%s362 + $0x28] sm:$0xff] %v373
                  %v375 = vld [vmem:[%s361 + $0x60] sm:$0xff]
                  %376 = vst [vmem:[%s362 + $0x30] sm:$0xff] %v375
                  %v377 = vld [vmem:[%s361 + $0x70] sm:$0xff]
                  %378 = vst [vmem:[%s362 + $0x38] sm:$0xff] %v377
                  %v379 = vld [vmem:[%s361 + $0x80] sm:$0xff]
                  %380 = vst [vmem:[%s362 + $0x40] sm:$0xff] %v379
                  %v381 = vld [vmem:[%s361 + $0x90] sm:$0xff]
                  %382 = vst [vmem:[%s362 + $0x48] sm:$0xff] %v381
                  %v383 = vld [vmem:[%s361 + $0xa0] sm:$0xff]
                  %384 = vst [vmem:[%s362 + $0x50] sm:$0xff] %v383
                  %v385 = vld [vmem:[%s361 + $0xb0] sm:$0xff]
                  %386 = vst [vmem:[%s362 + $0x58] sm:$0xff] %v385
                  %v387 = vld [vmem:[%s361 + $0xc0] sm:$0xff]
                  %388 = vst [vmem:[%s362 + $0x60] sm:$0xff] %v387
                  %v389 = vld [vmem:[%s361 + $0xd0] sm:$0xff]
                  %390 = vst [vmem:[%s362 + $0x68] sm:$0xff] %v389
                  %v391 = vld [vmem:[%s361 + $0xe0] sm:$0xff]
                  %392 = vst [vmem:[%s362 + $0x70] sm:$0xff] %v391
                  %v393 = vld [vmem:[%s361 + $0xf0] sm:$0xff]
                  %394 = vst [vmem:[%s362 + $0x78] sm:$0xff] %v393
                  %v395 = vld [vmem:[%s361 + $0x100] sm:$0xff]
                  %396 = vst [vmem:[%s362 + $0x80] sm:$0xff] %v395
                  %v397 = vld [vmem:[%s361 + $0x110] sm:$0xff]
                  %398 = vst [vmem:[%s362 + $0x88] sm:$0xff] %v397
                  %v399 = vld [vmem:[%s361 + $0x120] sm:$0xff]
                  %400 = vst [vmem:[%s362 + $0x90] sm:$0xff] %v399
                  %v401 = vld [vmem:[%s361 + $0x130] sm:$0xff]
                  %402 = vst [vmem:[%s362 + $0x98] sm:$0xff] %v401
                  %v403 = vld [vmem:[%s361 + $0x140] sm:$0xff]
                  %404 = vst [vmem:[%s362 + $0xa0] sm:$0xff] %v403
                  %v405 = vld [vmem:[%s361 + $0x150] sm:$0xff]
                  %406 = vst [vmem:[%s362 + $0xa8] sm:$0xff] %v405
                  %v407 = vld [vmem:[%s361 + $0x160] sm:$0xff]
                  %408 = vst [vmem:[%s362 + $0xb0] sm:$0xff] %v407
                  %v409 = vld [vmem:[%s361 + $0x170] sm:$0xff]
                  %410 = vst [vmem:[%s362 + $0xb8] sm:$0xff] %v409
                  %v411 = vld [vmem:[%s361 + $0x180] sm:$0xff]
                  %412 = vst [vmem:[%s362 + $0xc0] sm:$0xff] %v411
                  %v413 = vld [vmem:[%s361 + $0x190] sm:$0xff]
                  %414 = vst [vmem:[%s362 + $0xc8] sm:$0xff] %v413
                  %v415 = vld [vmem:[%s361 + $0x1a0] sm:$0xff]
                  %416 = vst [vmem:[%s362 + $0xd0] sm:$0xff] %v415
                  %v417 = vld [vmem:[%s361 + $0x1b0] sm:$0xff]
                  %418 = vst [vmem:[%s362 + $0xd8] sm:$0xff] %v417
                  %v419 = vld [vmem:[%s361 + $0x1c0] sm:$0xff]
                  %420 = vst [vmem:[%s362 + $0xe0] sm:$0xff] %v419
                  %v421 = vld [vmem:[%s361 + $0x1d0] sm:$0xff]
                  %422 = vst [vmem:[%s362 + $0xe8] sm:$0xff] %v421
                  %v423 = vld [vmem:[%s361 + $0x1e0] sm:$0xff]
                  %424 = vst [vmem:[%s362 + $0xf0] sm:$0xff] %v423
                  %v425 = vld [vmem:[%s361 + $0x1f0] sm:$0xff]
                  %426 = vst [vmem:[%s362 + $0xf8] sm:$0xff] %v425
                $region75: #{gnn_layer.1} parent=69 // loop_footer
                  %s360 = sadd.s32 1, %s356
                $region76: #{gnn_layer.1} parent=69 // loop_footer_branch
                  %355 = sbr.rel target = $region72
                $region77: #{gnn_layer.1} parent=69 // loop_exit
                  _
              $region70: #{gnn_layer.1} parent=54 // pred_fallthru
                _
              // Predicated region
              $region78: #{gnn_layer.1} parent=54 // pred_check
                _
              $region79: #{gnn_layer.1} parent=54 // pred_check_branch
                %428 = sbr.rel target = $region81
              $region80: #{gnn_layer.1} parent=54 // pred_region
                _
              $region81: #{gnn_layer.1} parent=54 // pred_fallthru
                _
            $region55: #{gnn_layer.1} parent=50 // pred_fallthru
              _
            // Predicated region
            $region56: #{gnn_layer.1} parent=50 // pred_check
              _
            $region57: #{gnn_layer.1} parent=50 // pred_check_branch
              %278 = sbr.rel target = $region59
            $region58: #{gnn_layer.1} parent=50 // pred_region
              %s280 = ssub.s32 256, 1
              loop: start=0, step=1, limit=1
              $region60: #{gnn_layer.1} parent=58 // loop_pre_header
                _
              $region61: #{gnn_layer.1} parent=58 // loop_header
                %s282 = sphi 0, %s286
                %p283 = scmp.ge.s32.totalorder %s282, 1
                %s287 = sphi %s272, %s272
                %s288 = sphi %s266, %s266
              $region62: #{gnn_layer.1} parent=58 // loop_header_branch
                %285 = sbr.rel (%p283) target = $region66
              $region63: #{gnn_layer.1} parent=58 // loop_body
                %v289 = vld [vmem:[%s287] sm:%s280]
                %290 = vst [vmem:[%s288] sm:%s280] %v289
                %v291 = vld [vmem:[%s287 + $0x10] sm:%s280]
                %292 = vst [vmem:[%s288 + $0x8] sm:%s280] %v291
                %v293 = vld [vmem:[%s287 + $0x20] sm:%s280]
                %294 = vst [vmem:[%s288 + $0x10] sm:%s280] %v293
                %v295 = vld [vmem:[%s287 + $0x30] sm:%s280]
                %296 = vst [vmem:[%s288 + $0x18] sm:%s280] %v295
                %v297 = vld [vmem:[%s287 + $0x40] sm:%s280]
                %298 = vst [vmem:[%s288 + $0x20] sm:%s280] %v297
                %v299 = vld [vmem:[%s287 + $0x50] sm:%s280]
                %300 = vst [vmem:[%s288 + $0x28] sm:%s280] %v299
                %v301 = vld [vmem:[%s287 + $0x60] sm:%s280]
                %302 = vst [vmem:[%s288 + $0x30] sm:%s280] %v301
                %v303 = vld [vmem:[%s287 + $0x70] sm:%s280]
                %304 = vst [vmem:[%s288 + $0x38] sm:%s280] %v303
                %v305 = vld [vmem:[%s287 + $0x80] sm:%s280]
                %306 = vst [vmem:[%s288 + $0x40] sm:%s280] %v305
                %v307 = vld [vmem:[%s287 + $0x90] sm:%s280]
                %308 = vst [vmem:[%s288 + $0x48] sm:%s280] %v307
                %v309 = vld [vmem:[%s287 + $0xa0] sm:%s280]
                %310 = vst [vmem:[%s288 + $0x50] sm:%s280] %v309
                %v311 = vld [vmem:[%s287 + $0xb0] sm:%s280]
                %312 = vst [vmem:[%s288 + $0x58] sm:%s280] %v311
                %v313 = vld [vmem:[%s287 + $0xc0] sm:%s280]
                %314 = vst [vmem:[%s288 + $0x60] sm:%s280] %v313
                %v315 = vld [vmem:[%s287 + $0xd0] sm:%s280]
                %316 = vst [vmem:[%s288 + $0x68] sm:%s280] %v315
                %v317 = vld [vmem:[%s287 + $0xe0] sm:%s280]
                %318 = vst [vmem:[%s288 + $0x70] sm:%s280] %v317
                %v319 = vld [vmem:[%s287 + $0xf0] sm:%s280]
                %320 = vst [vmem:[%s288 + $0x78] sm:%s280] %v319
                %v321 = vld [vmem:[%s287 + $0x100] sm:%s280]
                %322 = vst [vmem:[%s288 + $0x80] sm:%s280] %v321
                %v323 = vld [vmem:[%s287 + $0x110] sm:%s280]
                %324 = vst [vmem:[%s288 + $0x88] sm:%s280] %v323
                %v325 = vld [vmem:[%s287 + $0x120] sm:%s280]
                %326 = vst [vmem:[%s288 + $0x90] sm:%s280] %v325
                %v327 = vld [vmem:[%s287 + $0x130] sm:%s280]
                %328 = vst [vmem:[%s288 + $0x98] sm:%s280] %v327
                %v329 = vld [vmem:[%s287 + $0x140] sm:%s280]
                %330 = vst [vmem:[%s288 + $0xa0] sm:%s280] %v329
                %v331 = vld [vmem:[%s287 + $0x150] sm:%s280]
                %332 = vst [vmem:[%s288 + $0xa8] sm:%s280] %v331
                %v333 = vld [vmem:[%s287 + $0x160] sm:%s280]
                %334 = vst [vmem:[%s288 + $0xb0] sm:%s280] %v333
                %v335 = vld [vmem:[%s287 + $0x170] sm:%s280]
                %336 = vst [vmem:[%s288 + $0xb8] sm:%s280] %v335
                %v337 = vld [vmem:[%s287 + $0x180] sm:%s280]
                %338 = vst [vmem:[%s288 + $0xc0] sm:%s280] %v337
                %v339 = vld [vmem:[%s287 + $0x190] sm:%s280]
                %340 = vst [vmem:[%s288 + $0xc8] sm:%s280] %v339
                %v341 = vld [vmem:[%s287 + $0x1a0] sm:%s280]
                %342 = vst [vmem:[%s288 + $0xd0] sm:%s280] %v341
                %v343 = vld [vmem:[%s287 + $0x1b0] sm:%s280]
                %344 = vst [vmem:[%s288 + $0xd8] sm:%s280] %v343
                %v345 = vld [vmem:[%s287 + $0x1c0] sm:%s280]
                %346 = vst [vmem:[%s288 + $0xe0] sm:%s280] %v345
                %v347 = vld [vmem:[%s287 + $0x1d0] sm:%s280]
                %348 = vst [vmem:[%s288 + $0xe8] sm:%s280] %v347
                %v349 = vld [vmem:[%s287 + $0x1e0] sm:%s280]
                %350 = vst [vmem:[%s288 + $0xf0] sm:%s280] %v349
                %v351 = vld [vmem:[%s287 + $0x1f0] sm:%s280]
                %352 = vst [vmem:[%s288 + $0xf8] sm:%s280] %v351
              $region64: #{gnn_layer.1} parent=58 // loop_footer
                %s286 = sadd.s32 1, %s282
              $region65: #{gnn_layer.1} parent=58 // loop_footer_branch
                %281 = sbr.rel target = $region61
              $region66: #{gnn_layer.1} parent=58 // loop_exit
                _
            $region59: #{gnn_layer.1} parent=50 // pred_fallthru
              _
          $region51: #{gnn_layer.1} parent=46 // pred_fallthru
            _
          %429 = vnop
        $region47: #{gnn_layer.1} parent=19 // pred_fallthru
          _
        // Predicated region
        $region82: #{gnn_layer.1} parent=19 // pred_check
          %p430 = pneg %p99
        $region83: #{gnn_layer.1} parent=19 // pred_check_branch
          %432 = sbr.rel (%p430) target = $region85
        $region84: #{gnn_layer.1} parent=19 // pred_region
          %s433 = smul.u32 32, %s19
          %p434 = scmp.lt.s32.totalorder %s433, 63
          %s435 = scalar_select %p434, %s433, 63
          %s436 = smul.addr %s435, 4
          %s437 = scalar_lea.vmem %s2, %s436
          %s438 = smul.u32 32, %s19
        $region85: #{gnn_layer.1} parent=19 // pred_fallthru
          _
        // Predicated region
        $region86: #{gnn_layer.1} parent=19 // pred_check
          %p439 = pneg %p125
        $region87: #{gnn_layer.1} parent=19 // pred_check_branch
          %441 = sbr.rel (%p439) target = $region89
        $region88: #{gnn_layer.1} parent=19 // pred_region
          %s442 = smul.u32 32, %s18
          %p443 = scmp.lt.s32.totalorder %s442, 63
          %s444 = scalar_select %p443, %s442, 63
          %s445 = smul.addr %s444, 4
          %s446 = scalar_lea.vmem %s3, %s445
          %s447 = smul.u32 32, %s18
        $region89: #{gnn_layer.1} parent=19 // pred_fallthru
          _
      $region20: #{gnn_layer.1} parent=5 // pred_fallthru
        _
      %p448 = scmp.le.s32.totalorder 1, %s11
      %p449 = scmp.lt.s32.totalorder %s11, 5
      %p450 = pnand %p448, %p449
      %p451 = pneg %p450
      // Predicated region
      $region90: #{gnn_layer.1} parent=5 // pred_check
        _
      $region91: #{gnn_layer.1} parent=5 // pred_check_branch
        %453 = sbr.rel (%p450) target = $region93
      $region92: #{gnn_layer.1} parent=5 // pred_region
        %s454 = ssub.s32 %s11, 1
        %s455 = sand.u32 %s38, 1
        %s456 = sand.u32 %s38, 1
        %s457 = smul.addr %s456, 128
        %s458 = scalar_lea.vmem [#allocation4], %s457
        // Predicated region
        $region94: #{gnn_layer.1} parent=92 // pred_check
          %p459 = pneg %p51
        $region95: #{gnn_layer.1} parent=92 // pred_check_branch
          %461 = sbr.rel (%p459) target = $region97
        $region96: #{gnn_layer.1} parent=92 // pred_region
          _
        $region97: #{gnn_layer.1} parent=92 // pred_fallthru
          _
        %s462 = sand.u32 %s66, 1
        %s463 = sand.u32 %s66, 1
        %s464 = smul.addr %s463, 256
        %s465 = scalar_lea.vmem [#allocation5], %s464
        // Predicated region
        $region98: #{gnn_layer.1} parent=92 // pred_check
          %p466 = pneg %p79
        $region99: #{gnn_layer.1} parent=92 // pred_check_branch
          %468 = sbr.rel (%p466) target = $region101
        $region100: #{gnn_layer.1} parent=92 // pred_region
          _
        $region101: #{gnn_layer.1} parent=92 // pred_fallthru
          _
        %s469 = sand.u32 %s38, 1
        %s470 = sand.u32 %s38, 1
        %s471 = smul.addr %s470, 128
        %s472 = scalar_lea.vmem [#allocation4], %s471
        %p473 = pneg %p51
        %p474 = pneg %p48
        %s475 = sand.u32 %s66, 1
        %s476 = sand.u32 %s66, 1
        %s477 = smul.addr %s476, 256
        %s478 = scalar_lea.vmem [#allocation5], %s477
        %p479 = pneg %p79
        %p480 = pneg %p76
        %s481 = smul.u32 32, %s21
        %p482 = scmp.lt.s32.totalorder %s481, 63
        %s483 = scalar_select %p482, %s481, 63
        %s484 = smul.addr %s483, 4
        %s485 = scalar_lea.vmem %s2, %s484
        %p486 = pneg %p105
        %p487 = pneg %p102
        %s488 = smul.u32 32, %s20
        %p489 = scmp.lt.s32.totalorder %s488, 63
        %s490 = scalar_select %p489, %s488, 63
        %s491 = smul.addr %s490, 4
        %s492 = scalar_lea.vmem %s3, %s491
        %p493 = pneg %p131
        %p494 = pneg %p128
        %p495 = pneg %p152
        %p496 = pneg %p149
        %p497 = pneg %p178
        %p498 = pneg %p175
        %s499 = smul.u32 32, %s20
        %p500 = scmp.lt.s32.totalorder %s499, 63
        %s501 = scalar_select %p500, %s499, 63
        %s502 = smul.addr %s501, 8
        %s503 = scalar_lea.vmem %s5, %s502
        %s504 = smul.u32 8, %s20
        %s505 = smul.u32 2, %s21
        %s506 = smul.u32 32, %s20
        %s507 = smul.u32 2, %s21
        %s508 = smul.u32 32, %s21
        %p509 = scmp.lt.s32.totalorder %s508, 63
        %s510 = scalar_select %p509, %s508, 63
        %s511 = smul.addr %s510, 4
        %s512 = scalar_lea.vmem %s2, %s511
        %s513 = smul.u32 32, %s21
        %s514 = smul.u32 32, %s20
        %p515 = scmp.lt.s32.totalorder %s514, 63
        %s516 = scalar_select %p515, %s514, 63
        %s517 = smul.addr %s516, 4
        %s518 = scalar_lea.vmem %s3, %s517
        %s519 = smul.u32 32, %s20
        %s520 = smul.u32 32, %s20
        %p521 = scmp.lt.s32.totalorder %s520, 63
        %s522 = scalar_select %p521, %s520, 63
        %s523 = smul.addr %s522, 8
        %s524 = scalar_lea.vmem %s5, %s523
        %s525 = smul.u32 32, %s20
        %p526 = scmp.eq.s32.totalorder %s21, 0
        // Predicated region
        $region102: #{gnn_layer.1} parent=92 // pred_check
          %p527 = pneg %p526
        $region103: #{gnn_layer.1} parent=92 // pred_check_branch
          %529 = sbr.rel (%p527) target = $region105
        $region104: #{gnn_layer.1} parent=92 // pred_region
          %530 = vst [vmem:[#allocation2] sm:$0xff] 0.0
          %531 = vst [vmem:[#allocation2 + $0x8] sm:$0xff] 0.0
          %532 = vst [vmem:[#allocation2 + $0x10] sm:$0xff] 0.0
          %533 = vst [vmem:[#allocation2 + $0x18] sm:$0xff] 0.0
          %534 = vst [vmem:[#allocation2 + $0x20] sm:$0xff] 0.0
          %535 = vst [vmem:[#allocation2 + $0x28] sm:$0xff] 0.0
          %536 = vst [vmem:[#allocation2 + $0x30] sm:$0xff] 0.0
          %537 = vst [vmem:[#allocation2 + $0x38] sm:$0xff] 0.0
          %538 = vst [vmem:[#allocation2 + $0x40] sm:$0xff] 0.0
          %539 = vst [vmem:[#allocation2 + $0x48] sm:$0xff] 0.0
          %540 = vst [vmem:[#allocation2 + $0x50] sm:$0xff] 0.0
          %541 = vst [vmem:[#allocation2 + $0x58] sm:$0xff] 0.0
          %542 = vst [vmem:[#allocation2 + $0x60] sm:$0xff] 0.0
          %543 = vst [vmem:[#allocation2 + $0x68] sm:$0xff] 0.0
          %544 = vst [vmem:[#allocation2 + $0x70] sm:$0xff] 0.0
          %545 = vst [vmem:[#allocation2 + $0x78] sm:$0xff] 0.0
          %546 = vst [vmem:[#allocation2 + $0x80] sm:$0xff] 0.0
          %547 = vst [vmem:[#allocation2 + $0x88] sm:$0xff] 0.0
          %548 = vst [vmem:[#allocation2 + $0x90] sm:$0xff] 0.0
          %549 = vst [vmem:[#allocation2 + $0x98] sm:$0xff] 0.0
          %550 = vst [vmem:[#allocation2 + $0xa0] sm:$0xff] 0.0
          %551 = vst [vmem:[#allocation2 + $0xa8] sm:$0xff] 0.0
          %552 = vst [vmem:[#allocation2 + $0xb0] sm:$0xff] 0.0
          %553 = vst [vmem:[#allocation2 + $0xb8] sm:$0xff] 0.0
          %554 = vst [vmem:[#allocation2 + $0xc0] sm:$0xff] 0.0
          %555 = vst [vmem:[#allocation2 + $0xc8] sm:$0xff] 0.0
          %556 = vst [vmem:[#allocation2 + $0xd0] sm:$0xff] 0.0
          %557 = vst [vmem:[#allocation2 + $0xd8] sm:$0xff] 0.0
          %558 = vst [vmem:[#allocation2 + $0xe0] sm:$0xff] 0.0
          %559 = vst [vmem:[#allocation2 + $0xe8] sm:$0xff] 0.0
          %560 = vst [vmem:[#allocation2 + $0xf0] sm:$0xff] 0.0
          %561 = vst [vmem:[#allocation2 + $0xf8] sm:$0xff] 0.0
          %562 = vst [vmem:[#allocation3] sm:$0xff] 0.0
          %563 = vst [vmem:[#allocation3 + $0x8] sm:$0xff] 0.0
          %564 = vst [vmem:[#allocation3 + $0x10] sm:$0xff] 0.0
          %565 = vst [vmem:[#allocation3 + $0x18] sm:$0xff] 0.0
          %566 = vst [vmem:[#allocation3 + $0x20] sm:$0xff] 0.0
          %567 = vst [vmem:[#allocation3 + $0x28] sm:$0xff] 0.0
          %568 = vst [vmem:[#allocation3 + $0x30] sm:$0xff] 0.0
          %569 = vst [vmem:[#allocation3 + $0x38] sm:$0xff] 0.0
          %570 = vst [vmem:[#allocation3 + $0x40] sm:$0xff] 0.0
          %571 = vst [vmem:[#allocation3 + $0x48] sm:$0xff] 0.0
          %572 = vst [vmem:[#allocation3 + $0x50] sm:$0xff] 0.0
          %573 = vst [vmem:[#allocation3 + $0x58] sm:$0xff] 0.0
          %574 = vst [vmem:[#allocation3 + $0x60] sm:$0xff] 0.0
          %575 = vst [vmem:[#allocation3 + $0x68] sm:$0xff] 0.0
          %576 = vst [vmem:[#allocation3 + $0x70] sm:$0xff] 0.0
          %577 = vst [vmem:[#allocation3 + $0x78] sm:$0xff] 0.0
          %578 = vst [vmem:[#allocation3 + $0x80] sm:$0xff] 0.0
          %579 = vst [vmem:[#allocation3 + $0x88] sm:$0xff] 0.0
          %580 = vst [vmem:[#allocation3 + $0x90] sm:$0xff] 0.0
          %581 = vst [vmem:[#allocation3 + $0x98] sm:$0xff] 0.0
          %582 = vst [vmem:[#allocation3 + $0xa0] sm:$0xff] 0.0
          %583 = vst [vmem:[#allocation3 + $0xa8] sm:$0xff] 0.0
          %584 = vst [vmem:[#allocation3 + $0xb0] sm:$0xff] 0.0
          %585 = vst [vmem:[#allocation3 + $0xb8] sm:$0xff] 0.0
          %586 = vst [vmem:[#allocation3 + $0xc0] sm:$0xff] 0.0
          %587 = vst [vmem:[#allocation3 + $0xc8] sm:$0xff] 0.0
          %588 = vst [vmem:[#allocation3 + $0xd0] sm:$0xff] 0.0
          %589 = vst [vmem:[#allocation3 + $0xd8] sm:$0xff] 0.0
          %590 = vst [vmem:[#allocation3 + $0xe0] sm:$0xff] 0.0
          %591 = vst [vmem:[#allocation3 + $0xe8] sm:$0xff] 0.0
          %592 = vst [vmem:[#allocation3 + $0xf0] sm:$0xff] 0.0
          %593 = vst [vmem:[#allocation3 + $0xf8] sm:$0xff] 0.0
        $region105: #{gnn_layer.1} parent=92 // pred_fallthru
          _
        %v594 = vld [vmem:[%s512] sm:$0xf]
        %v595 = vld [vmem:[%s512 + $0x4] sm:$0xf]
        %v596 = vld [vmem:[%s512 + $0x8] sm:$0xf]
        %v597 = vld [vmem:[%s512 + $0xc] sm:$0xf]
        %v598 = vld [vmem:[%s512 + $0x10] sm:$0xf]
        %v599 = vld [vmem:[%s512 + $0x14] sm:$0xf]
        %v600 = vld [vmem:[%s512 + $0x18] sm:$0xf]
        %v601 = vld [vmem:[%s512 + $0x1c] sm:$0xf]
        %v602 = vld [vmem:[%s512 + $0x20] sm:$0xf]
        %v603 = vld [vmem:[%s512 + $0x24] sm:$0xf]
        %v604 = vld [vmem:[%s512 + $0x28] sm:$0xf]
        %v605 = vld [vmem:[%s512 + $0x2c] sm:$0xf]
        %v606 = vld [vmem:[%s512 + $0x30] sm:$0xf]
        %v607 = vld [vmem:[%s512 + $0x34] sm:$0xf]
        %v608 = vld [vmem:[%s512 + $0x38] sm:$0xf]
        %v609 = vld [vmem:[%s512 + $0x3c] sm:$0xf]
        %v610 = vld [vmem:[%s512 + $0x40] sm:$0xf]
        %v611 = vld [vmem:[%s512 + $0x44] sm:$0xf]
        %v612 = vld [vmem:[%s512 + $0x48] sm:$0xf]
        %v613 = vld [vmem:[%s512 + $0x4c] sm:$0xf]
        %v614 = vld [vmem:[%s512 + $0x50] sm:$0xf]
        %v615 = vld [vmem:[%s512 + $0x54] sm:$0xf]
        %v616 = vld [vmem:[%s512 + $0x58] sm:$0xf]
        %v617 = vld [vmem:[%s512 + $0x5c] sm:$0xf]
        %v618 = vld [vmem:[%s512 + $0x60] sm:$0xf]
        %v619 = vld [vmem:[%s512 + $0x64] sm:$0xf]
        %v620 = vld [vmem:[%s512 + $0x68] sm:$0xf]
        %v621 = vld [vmem:[%s512 + $0x6c] sm:$0xf]
        %v622 = vld [vmem:[%s512 + $0x70] sm:$0xf]
        %v623 = vld [vmem:[%s512 + $0x74] sm:$0xf]
        %v624 = vld [vmem:[%s512 + $0x78] sm:$0xf]
        %v625 = vld [vmem:[%s512 + $0x7c] sm:$0xf]
        %v626 = vld [vmem:[%s458] sm:$0xff]
        %v627 = vld [vmem:[%s458 + $0x8] sm:$0xff]
        %v628 = vld [vmem:[%s458 + $0x10] sm:$0xff]
        %v629 = vld [vmem:[%s458 + $0x18] sm:$0xff]
        %v630 = vld [vmem:[%s458 + $0x20] sm:$0xff]
        %v631 = vld [vmem:[%s458 + $0x28] sm:$0xff]
        %v632 = vld [vmem:[%s458 + $0x30] sm:$0xff]
        %v633 = vld [vmem:[%s458 + $0x38] sm:$0xff]
        %v634 = vld [vmem:[%s458 + $0x40] sm:$0xff]
        %v635 = vld [vmem:[%s458 + $0x48] sm:$0xff]
        %v636 = vld [vmem:[%s458 + $0x50] sm:$0xff]
        %v637 = vld [vmem:[%s458 + $0x58] sm:$0xff]
        %v638 = vld [vmem:[%s458 + $0x60] sm:$0xff]
        %v639 = vld [vmem:[%s458 + $0x68] sm:$0xff]
        %v640 = vld [vmem:[%s458 + $0x70] sm:$0xff]
        %v641 = vld [vmem:[%s458 + $0x78] sm:$0xff]
        %v642 = vunpack.c.0.s8 %v626
        %v643 = vunpack.c.0.s8 %v627
        %v644 = vunpack.c.1.s8 %v626
        %v645 = vunpack.c.1.s8 %v627
        %v646 = vunpack.c.2.s8 %v626
        %v647 = vunpack.c.2.s8 %v627
        %v648 = vunpack.c.3.s8 %v626
        %v649 = vunpack.c.3.s8 %v627
        %v650 = vunpack.c.0.s8 %v628
        %v651 = vunpack.c.0.s8 %v629
        %v652 = vunpack.c.1.s8 %v628
        %v653 = vunpack.c.1.s8 %v629
        %v654 = vunpack.c.2.s8 %v628
        %v655 = vunpack.c.2.s8 %v629
        %v656 = vunpack.c.3.s8 %v628
        %v657 = vunpack.c.3.s8 %v629
        %v658 = vunpack.c.0.s8 %v630
        %v659 = vunpack.c.0.s8 %v631
        %v660 = vunpack.c.1.s8 %v630
        %v661 = vunpack.c.1.s8 %v631
        %v662 = vunpack.c.2.s8 %v630
        %v663 = vunpack.c.2.s8 %v631
        %v664 = vunpack.c.3.s8 %v630
        %v665 = vunpack.c.3.s8 %v631
        %v666 = vunpack.c.0.s8 %v632
        %v667 = vunpack.c.0.s8 %v633
        %v668 = vunpack.c.1.s8 %v632
        %v669 = vunpack.c.1.s8 %v633
        %v670 = vunpack.c.2.s8 %v632
        %v671 = vunpack.c.2.s8 %v633
        %v672 = vunpack.c.3.s8 %v632
        %v673 = vunpack.c.3.s8 %v633
        %v674 = vunpack.c.0.s8 %v634
        %v675 = vunpack.c.0.s8 %v635
        %v676 = vunpack.c.1.s8 %v634
        %v677 = vunpack.c.1.s8 %v635
        %v678 = vunpack.c.2.s8 %v634
        %v679 = vunpack.c.2.s8 %v635
        %v680 = vunpack.c.3.s8 %v634
        %v681 = vunpack.c.3.s8 %v635
        %v682 = vunpack.c.0.s8 %v636
        %v683 = vunpack.c.0.s8 %v637
        %v684 = vunpack.c.1.s8 %v636
        %v685 = vunpack.c.1.s8 %v637
        %v686 = vunpack.c.2.s8 %v636
        %v687 = vunpack.c.2.s8 %v637
        %v688 = vunpack.c.3.s8 %v636
        %v689 = vunpack.c.3.s8 %v637
        %v690 = vunpack.c.0.s8 %v638
        %v691 = vunpack.c.0.s8 %v639
        %v692 = vunpack.c.1.s8 %v638
        %v693 = vunpack.c.1.s8 %v639
        %v694 = vunpack.c.2.s8 %v638
        %v695 = vunpack.c.2.s8 %v639
        %v696 = vunpack.c.3.s8 %v638
        %v697 = vunpack.c.3.s8 %v639
        %v698 = vunpack.c.0.s8 %v640
        %v699 = vunpack.c.0.s8 %v641
        %v700 = vunpack.c.1.s8 %v640
        %v701 = vunpack.c.1.s8 %v641
        %v702 = vunpack.c.2.s8 %v640
        %v703 = vunpack.c.2.s8 %v641
        %v704 = vunpack.c.3.s8 %v640
        %v705 = vunpack.c.3.s8 %v641
        %v706 = vcvt.s32.f32 %v642
        %v707 = vcvt.s32.f32 %v643
        %v708 = vcvt.s32.f32 %v644
        %v709 = vcvt.s32.f32 %v645
        %v710 = vcvt.s32.f32 %v646
        %v711 = vcvt.s32.f32 %v647
        %v712 = vcvt.s32.f32 %v648
        %v713 = vcvt.s32.f32 %v649
        %v714 = vcvt.s32.f32 %v650
        %v715 = vcvt.s32.f32 %v651
        %v716 = vcvt.s32.f32 %v652
        %v717 = vcvt.s32.f32 %v653
        %v718 = vcvt.s32.f32 %v654
        %v719 = vcvt.s32.f32 %v655
        %v720 = vcvt.s32.f32 %v656
        %v721 = vcvt.s32.f32 %v657
        %v722 = vcvt.s32.f32 %v658
        %v723 = vcvt.s32.f32 %v659
        %v724 = vcvt.s32.f32 %v660
        %v725 = vcvt.s32.f32 %v661
        %v726 = vcvt.s32.f32 %v662
        %v727 = vcvt.s32.f32 %v663
        %v728 = vcvt.s32.f32 %v664
        %v729 = vcvt.s32.f32 %v665
        %v730 = vcvt.s32.f32 %v666
        %v731 = vcvt.s32.f32 %v667
        %v732 = vcvt.s32.f32 %v668
        %v733 = vcvt.s32.f32 %v669
        %v734 = vcvt.s32.f32 %v670
        %v735 = vcvt.s32.f32 %v671
        %v736 = vcvt.s32.f32 %v672
        %v737 = vcvt.s32.f32 %v673
        %v738 = vcvt.s32.f32 %v674
        %v739 = vcvt.s32.f32 %v675
        %v740 = vcvt.s32.f32 %v676
        %v741 = vcvt.s32.f32 %v677
        %v742 = vcvt.s32.f32 %v678
        %v743 = vcvt.s32.f32 %v679
        %v744 = vcvt.s32.f32 %v680
        %v745 = vcvt.s32.f32 %v681
        %v746 = vcvt.s32.f32 %v682
        %v747 = vcvt.s32.f32 %v683
        %v748 = vcvt.s32.f32 %v684
        %v749 = vcvt.s32.f32 %v685
        %v750 = vcvt.s32.f32 %v686
        %v751 = vcvt.s32.f32 %v687
        %v752 = vcvt.s32.f32 %v688
        %v753 = vcvt.s32.f32 %v689
        %v754 = vcvt.s32.f32 %v690
        %v755 = vcvt.s32.f32 %v691
        %v756 = vcvt.s32.f32 %v692
        %v757 = vcvt.s32.f32 %v693
        %v758 = vcvt.s32.f32 %v694
        %v759 = vcvt.s32.f32 %v695
        %v760 = vcvt.s32.f32 %v696
        %v761 = vcvt.s32.f32 %v697
        %v762 = vcvt.s32.f32 %v698
        %v763 = vcvt.s32.f32 %v699
        %v764 = vcvt.s32.f32 %v700
        %v765 = vcvt.s32.f32 %v701
        %v766 = vcvt.s32.f32 %v702
        %v767 = vcvt.s32.f32 %v703
        %v768 = vcvt.s32.f32 %v704
        %v769 = vcvt.s32.f32 %v705
        %v770 = vpack.c.bf16 %v708, %v706
        %v771 = vpack.c.bf16 %v709, %v707
        %v772 = vpack.c.bf16 %v712, %v710
        %v773 = vpack.c.bf16 %v713, %v711
        %v774 = vpack.c.bf16 %v716, %v714
        %v775 = vpack.c.bf16 %v717, %v715
        %v776 = vpack.c.bf16 %v720, %v718
        %v777 = vpack.c.bf16 %v721, %v719
        %v778 = vpack.c.bf16 %v724, %v722
        %v779 = vpack.c.bf16 %v725, %v723
        %v780 = vpack.c.bf16 %v728, %v726
        %v781 = vpack.c.bf16 %v729, %v727
        %v782 = vpack.c.bf16 %v732, %v730
        %v783 = vpack.c.bf16 %v733, %v731
        %v784 = vpack.c.bf16 %v736, %v734
        %v785 = vpack.c.bf16 %v737, %v735
        %v786 = vpack.c.bf16 %v740, %v738
        %v787 = vpack.c.bf16 %v741, %v739
        %v788 = vpack.c.bf16 %v744, %v742
        %v789 = vpack.c.bf16 %v745, %v743
        %v790 = vpack.c.bf16 %v748, %v746
        %v791 = vpack.c.bf16 %v749, %v747
        %v792 = vpack.c.bf16 %v752, %v750
        %v793 = vpack.c.bf16 %v753, %v751
        %v794 = vpack.c.bf16 %v756, %v754
        %v795 = vpack.c.bf16 %v757, %v755
        %v796 = vpack.c.bf16 %v760, %v758
        %v797 = vpack.c.bf16 %v761, %v759
        %v798 = vpack.c.bf16 %v764, %v762
        %v799 = vpack.c.bf16 %v765, %v763
        %v800 = vpack.c.bf16 %v768, %v766
        %v801 = vpack.c.bf16 %v769, %v767
        %v802 = vld [vmem:[#allocation2] sm:$0xff]
        %v803 = vld [vmem:[#allocation2 + $0x8] sm:$0xff]
        %v804 = vld [vmem:[#allocation2 + $0x10] sm:$0xff]
        %v805 = vld [vmem:[#allocation2 + $0x18] sm:$0xff]
        %v806 = vld [vmem:[#allocation2 + $0x20] sm:$0xff]
        %v807 = vld [vmem:[#allocation2 + $0x28] sm:$0xff]
        %v808 = vld [vmem:[#allocation2 + $0x30] sm:$0xff]
        %v809 = vld [vmem:[#allocation2 + $0x38] sm:$0xff]
        %v810 = vld [vmem:[#allocation2 + $0x40] sm:$0xff]
        %v811 = vld [vmem:[#allocation2 + $0x48] sm:$0xff]
        %v812 = vld [vmem:[#allocation2 + $0x50] sm:$0xff]
        %v813 = vld [vmem:[#allocation2 + $0x58] sm:$0xff]
        %v814 = vld [vmem:[#allocation2 + $0x60] sm:$0xff]
        %v815 = vld [vmem:[#allocation2 + $0x68] sm:$0xff]
        %v816 = vld [vmem:[#allocation2 + $0x70] sm:$0xff]
        %v817 = vld [vmem:[#allocation2 + $0x78] sm:$0xff]
        %v818 = vld [vmem:[#allocation2 + $0x80] sm:$0xff]
        %v819 = vld [vmem:[#allocation2 + $0x88] sm:$0xff]
        %v820 = vld [vmem:[#allocation2 + $0x90] sm:$0xff]
        %v821 = vld [vmem:[#allocation2 + $0x98] sm:$0xff]
        %v822 = vld [vmem:[#allocation2 + $0xa0] sm:$0xff]
        %v823 = vld [vmem:[#allocation2 + $0xa8] sm:$0xff]
        %v824 = vld [vmem:[#allocation2 + $0xb0] sm:$0xff]
        %v825 = vld [vmem:[#allocation2 + $0xb8] sm:$0xff]
        %v826 = vld [vmem:[#allocation2 + $0xc0] sm:$0xff]
        %v827 = vld [vmem:[#allocation2 + $0xc8] sm:$0xff]
        %v828 = vld [vmem:[#allocation2 + $0xd0] sm:$0xff]
        %v829 = vld [vmem:[#allocation2 + $0xd8] sm:$0xff]
        %v830 = vld [vmem:[#allocation2 + $0xe0] sm:$0xff]
        %v831 = vld [vmem:[#allocation2 + $0xe8] sm:$0xff]
        %v832 = vld [vmem:[#allocation2 + $0xf0] sm:$0xff]
        %v833 = vld [vmem:[#allocation2 + $0xf8] sm:$0xff]
        %v866 = vunpack.c.l.b16 %v594
        %v867 = vunpack.c.l.b16 %v595
        %v868 = vunpack.c.l.b16 %v596
        %v869 = vunpack.c.l.b16 %v597
        %v870 = vunpack.c.l.b16 %v598
        %v871 = vunpack.c.l.b16 %v599
        %v872 = vunpack.c.l.b16 %v600
        %v873 = vunpack.c.l.b16 %v601
        %v874 = vunpack.c.l.b16 %v602
        %v875 = vunpack.c.l.b16 %v603
        %v876 = vunpack.c.l.b16 %v604
        %v877 = vunpack.c.l.b16 %v605
        %v878 = vunpack.c.l.b16 %v606
        %v879 = vunpack.c.l.b16 %v607
        %v880 = vunpack.c.l.b16 %v608
        %v881 = vunpack.c.l.b16 %v609
        %v882 = vunpack.c.l.b16 %v610
        %v883 = vunpack.c.l.b16 %v611
        %v884 = vunpack.c.l.b16 %v612
        %v885 = vunpack.c.l.b16 %v613
        %v886 = vunpack.c.l.b16 %v614
        %v887 = vunpack.c.l.b16 %v615
        %v888 = vunpack.c.l.b16 %v616
        %v889 = vunpack.c.l.b16 %v617
        %v890 = vunpack.c.l.b16 %v618
        %v891 = vunpack.c.l.b16 %v619
        %v892 = vunpack.c.l.b16 %v620
        %v893 = vunpack.c.l.b16 %v621
        %v894 = vunpack.c.l.b16 %v622
        %v895 = vunpack.c.l.b16 %v623
        %v896 = vunpack.c.l.b16 %v624
        %v897 = vunpack.c.l.b16 %v625
        %v898 = vpack.c.b16 %v867, %v866
        %v899 = vpack.c.b16 %v869, %v868
        %v900 = vpack.c.b16 %v871, %v870
        %v901 = vpack.c.b16 %v873, %v872
        %v902 = vpack.c.b16 %v875, %v874
        %v903 = vpack.c.b16 %v877, %v876
        %v904 = vpack.c.b16 %v879, %v878
        %v905 = vpack.c.b16 %v881, %v880
        %v906 = vpack.c.b16 %v883, %v882
        %v907 = vpack.c.b16 %v885, %v884
        %v908 = vpack.c.b16 %v887, %v886
        %v909 = vpack.c.b16 %v889, %v888
        %v910 = vpack.c.b16 %v891, %v890
        %v911 = vpack.c.b16 %v893, %v892
        %v912 = vpack.c.b16 %v895, %v894
        %v913 = vpack.c.b16 %v897, %v896
        %930 = vmatpush.bf16.msra.mxu0 %v905
        %931 = vmatpush.bf16.msra.mxu0 %v904
        %932 = vmatpush.bf16.msra.mxu0 %v903
        %933 = vmatpush.bf16.msra.mxu0 %v902
        %934 = vmatpush.bf16.msra.mxu0 %v901
        %935 = vmatpush.bf16.msra.mxu0 %v900
        %936 = vmatpush.bf16.msra.mxu0 %v899
        %937 = vmatpush.bf16.msra.mxu0 %v898
        %938 = vmatmul.bf16.gmra.mxu0 %v770
        %v939 = vpop.f32.mrf.mxu0
        %v940 = vadd.f32 0.0, %v939
        %v941 = vpop.f32.mrf.mxu0
        %v942 = vadd.f32 0.0, %v941
        %943 = vmatmul.bf16.gmra.mxu0 %v772
        %v944 = vpop.f32.mrf.mxu0
        %v945 = vadd.f32 0.0, %v944
        %v946 = vpop.f32.mrf.mxu0
        %v947 = vadd.f32 0.0, %v946
        %948 = vmatmul.bf16.gmra.mxu0 %v774
        %v949 = vpop.f32.mrf.mxu0
        %v950 = vadd.f32 0.0, %v949
        %v951 = vpop.f32.mrf.mxu0
        %v952 = vadd.f32 0.0, %v951
        %953 = vmatmul.bf16.gmra.mxu0 %v776
        %v954 = vpop.f32.mrf.mxu0
        %v955 = vadd.f32 0.0, %v954
        %v956 = vpop.f32.mrf.mxu0
        %v957 = vadd.f32 0.0, %v956
        %958 = vmatmul.bf16.gmra.mxu0 %v778
        %v959 = vpop.f32.mrf.mxu0
        %v960 = vadd.f32 0.0, %v959
        %v961 = vpop.f32.mrf.mxu0
        %v962 = vadd.f32 0.0, %v961
        %963 = vmatmul.bf16.gmra.mxu0 %v780
        %v964 = vpop.f32.mrf.mxu0
        %v965 = vadd.f32 0.0, %v964
        %v966 = vpop.f32.mrf.mxu0
        %v967 = vadd.f32 0.0, %v966
        %968 = vmatmul.bf16.gmra.mxu0 %v782
        %v969 = vpop.f32.mrf.mxu0
        %v970 = vadd.f32 0.0, %v969
        %v971 = vpop.f32.mrf.mxu0
        %v972 = vadd.f32 0.0, %v971
        %973 = vmatmul.bf16.gmra.mxu0 %v784
        %v974 = vpop.f32.mrf.mxu0
        %v975 = vadd.f32 0.0, %v974
        %v976 = vpop.f32.mrf.mxu0
        %v977 = vadd.f32 0.0, %v976
        %978 = vmatmul.bf16.gmra.mxu0 %v786
        %v979 = vpop.f32.mrf.mxu0
        %v980 = vadd.f32 0.0, %v979
        %v981 = vpop.f32.mrf.mxu0
        %v982 = vadd.f32 0.0, %v981
        %983 = vmatmul.bf16.gmra.mxu0 %v788
        %v984 = vpop.f32.mrf.mxu0
        %v985 = vadd.f32 0.0, %v984
        %v986 = vpop.f32.mrf.mxu0
        %v987 = vadd.f32 0.0, %v986
        %988 = vmatmul.bf16.gmra.mxu0 %v790
        %v989 = vpop.f32.mrf.mxu0
        %v990 = vadd.f32 0.0, %v989
        %v991 = vpop.f32.mrf.mxu0
        %v992 = vadd.f32 0.0, %v991
        %993 = vmatmul.bf16.gmra.mxu0 %v792
        %v994 = vpop.f32.mrf.mxu0
        %v995 = vadd.f32 0.0, %v994
        %v996 = vpop.f32.mrf.mxu0
        %v997 = vadd.f32 0.0, %v996
        %998 = vmatmul.bf16.gmra.mxu0 %v794
        %v999 = vpop.f32.mrf.mxu0
        %v1000 = vadd.f32 0.0, %v999
        %v1001 = vpop.f32.mrf.mxu0
        %v1002 = vadd.f32 0.0, %v1001
        %1003 = vmatmul.bf16.gmra.mxu0 %v796
        %v1004 = vpop.f32.mrf.mxu0
        %v1005 = vadd.f32 0.0, %v1004
        %v1006 = vpop.f32.mrf.mxu0
        %v1007 = vadd.f32 0.0, %v1006
        %1008 = vmatmul.bf16.gmra.mxu0 %v798
        %v1009 = vpop.f32.mrf.mxu0
        %v1010 = vadd.f32 0.0, %v1009
        %v1011 = vpop.f32.mrf.mxu0
        %v1012 = vadd.f32 0.0, %v1011
        %1013 = vmatmul.bf16.gmra.mxu0 %v800
        %v1014 = vpop.f32.mrf.mxu0
        %v1015 = vadd.f32 0.0, %v1014
        %v1016 = vpop.f32.mrf.mxu0
        %v1017 = vadd.f32 0.0, %v1016
        %1018 = vdwg.mxu0
        %1019 = vmatpush.bf16.msra.mxu0 %v913
        %1020 = vmatpush.bf16.msra.mxu0 %v912
        %1021 = vmatpush.bf16.msra.mxu0 %v911
        %1022 = vmatpush.bf16.msra.mxu0 %v910
        %1023 = vmatpush.bf16.msra.mxu0 %v909
        %1024 = vmatpush.bf16.msra.mxu0 %v908
        %1025 = vmatpush.bf16.msra.mxu0 %v907
        %1026 = vmatpush.bf16.msra.mxu0 %v906
        %1027 = vmatmul.bf16.gmra.mxu0 %v771
        %v1028 = vpop.f32.mrf.mxu0
        %v1029 = vadd.f32 %v940, %v1028
        %v1030 = vpop.f32.mrf.mxu0
        %v1031 = vadd.f32 %v942, %v1030
        %1032 = vmatmul.bf16.gmra.mxu0 %v773
        %v1033 = vpop.f32.mrf.mxu0
        %v1034 = vadd.f32 %v945, %v1033
        %v1035 = vpop.f32.mrf.mxu0
        %v1036 = vadd.f32 %v947, %v1035
        %1037 = vmatmul.bf16.gmra.mxu0 %v775
        %v1038 = vpop.f32.mrf.mxu0
        %v1039 = vadd.f32 %v950, %v1038
        %v1040 = vpop.f32.mrf.mxu0
        %v1041 = vadd.f32 %v952, %v1040
        %1042 = vmatmul.bf16.gmra.mxu0 %v777
        %v1043 = vpop.f32.mrf.mxu0
        %v1044 = vadd.f32 %v955, %v1043
        %v1045 = vpop.f32.mrf.mxu0
        %v1046 = vadd.f32 %v957, %v1045
        %1047 = vmatmul.bf16.gmra.mxu0 %v779
        %v1048 = vpop.f32.mrf.mxu0
        %v1049 = vadd.f32 %v960, %v1048
        %v1050 = vpop.f32.mrf.mxu0
        %v1051 = vadd.f32 %v962, %v1050
        %1052 = vmatmul.bf16.gmra.mxu0 %v781
        %v1053 = vpop.f32.mrf.mxu0
        %v1054 = vadd.f32 %v965, %v1053
        %v1055 = vpop.f32.mrf.mxu0
        %v1056 = vadd.f32 %v967, %v1055
        %1057 = vmatmul.bf16.gmra.mxu0 %v783
        %v1058 = vpop.f32.mrf.mxu0
        %v1059 = vadd.f32 %v970, %v1058
        %v1060 = vpop.f32.mrf.mxu0
        %v1061 = vadd.f32 %v972, %v1060
        %1062 = vmatmul.bf16.gmra.mxu0 %v785
        %v1063 = vpop.f32.mrf.mxu0
        %v1064 = vadd.f32 %v975, %v1063
        %v1065 = vpop.f32.mrf.mxu0
        %v1066 = vadd.f32 %v977, %v1065
        %1067 = vmatmul.bf16.gmra.mxu0 %v787
        %v1068 = vpop.f32.mrf.mxu0
        %v1069 = vadd.f32 %v980, %v1068
        %v1070 = vpop.f32.mrf.mxu0
        %v1071 = vadd.f32 %v982, %v1070
        %1072 = vmatmul.bf16.gmra.mxu0 %v789
        %v1073 = vpop.f32.mrf.mxu0
        %v1074 = vadd.f32 %v985, %v1073
        %v1075 = vpop.f32.mrf.mxu0
        %v1076 = vadd.f32 %v987, %v1075
        %1077 = vmatmul.bf16.gmra.mxu0 %v791
        %v1078 = vpop.f32.mrf.mxu0
        %v1079 = vadd.f32 %v990, %v1078
        %v1080 = vpop.f32.mrf.mxu0
        %v1081 = vadd.f32 %v992, %v1080
        %1082 = vmatmul.bf16.gmra.mxu0 %v793
        %v1083 = vpop.f32.mrf.mxu0
        %v1084 = vadd.f32 %v995, %v1083
        %v1085 = vpop.f32.mrf.mxu0
        %v1086 = vadd.f32 %v997, %v1085
        %1087 = vmatmul.bf16.gmra.mxu0 %v795
        %v1088 = vpop.f32.mrf.mxu0
        %v1089 = vadd.f32 %v1000, %v1088
        %v1090 = vpop.f32.mrf.mxu0
        %v1091 = vadd.f32 %v1002, %v1090
        %1092 = vmatmul.bf16.gmra.mxu0 %v797
        %v1093 = vpop.f32.mrf.mxu0
        %v1094 = vadd.f32 %v1005, %v1093
        %v1095 = vpop.f32.mrf.mxu0
        %v1096 = vadd.f32 %v1007, %v1095
        %1097 = vmatmul.bf16.gmra.mxu0 %v799
        %v1098 = vpop.f32.mrf.mxu0
        %v1099 = vadd.f32 %v1010, %v1098
        %v1100 = vpop.f32.mrf.mxu0
        %v1101 = vadd.f32 %v1012, %v1100
        %1102 = vmatmul.bf16.gmra.mxu0 %v801
        %v1103 = vpop.f32.mrf.mxu0
        %v1104 = vadd.f32 %v1015, %v1103
        %v1105 = vpop.f32.mrf.mxu0
        %v1106 = vadd.f32 %v1017, %v1105
        %1107 = vdwg.mxu0
        %v1108 = vadd.f32 %v802, %v1029
        %v1109 = vadd.f32 %v803, %v1031
        %v1110 = vadd.f32 %v804, %v1034
        %v1111 = vadd.f32 %v805, %v1036
        %v1112 = vadd.f32 %v806, %v1039
        %v1113 = vadd.f32 %v807, %v1041
        %v1114 = vadd.f32 %v808, %v1044
        %v1115 = vadd.f32 %v809, %v1046
        %v1116 = vadd.f32 %v810, %v1049
        %v1117 = vadd.f32 %v811, %v1051
        %v1118 = vadd.f32 %v812, %v1054
        %v1119 = vadd.f32 %v813, %v1056
        %v1120 = vadd.f32 %v814, %v1059
        %v1121 = vadd.f32 %v815, %v1061
        %v1122 = vadd.f32 %v816, %v1064
        %v1123 = vadd.f32 %v817, %v1066
        %v1124 = vadd.f32 %v818, %v1069
        %v1125 = vadd.f32 %v819, %v1071
        %v1126 = vadd.f32 %v820, %v1074
        %v1127 = vadd.f32 %v821, %v1076
        %v1128 = vadd.f32 %v822, %v1079
        %v1129 = vadd.f32 %v823, %v1081
        %v1130 = vadd.f32 %v824, %v1084
        %v1131 = vadd.f32 %v825, %v1086
        %v1132 = vadd.f32 %v826, %v1089
        %v1133 = vadd.f32 %v827, %v1091
        %v1134 = vadd.f32 %v828, %v1094
        %v1135 = vadd.f32 %v829, %v1096
        %v1136 = vadd.f32 %v830, %v1099
        %v1137 = vadd.f32 %v831, %v1101
        %v1138 = vadd.f32 %v832, %v1104
        %v1139 = vadd.f32 %v833, %v1106
        %1140 = vst [vmem:[#allocation2] sm:$0xff] %v1108
        %1141 = vst [vmem:[#allocation2 + $0x8] sm:$0xff] %v1109
        %1142 = vst [vmem:[#allocation2 + $0x10] sm:$0xff] %v1110
        %1143 = vst [vmem:[#allocation2 + $0x18] sm:$0xff] %v1111
        %1144 = vst [vmem:[#allocation2 + $0x20] sm:$0xff] %v1112
        %1145 = vst [vmem:[#allocation2 + $0x28] sm:$0xff] %v1113
        %1146 = vst [vmem:[#allocation2 + $0x30] sm:$0xff] %v1114
        %1147 = vst [vmem:[#allocation2 + $0x38] sm:$0xff] %v1115
        %1148 = vst [vmem:[#allocation2 + $0x40] sm:$0xff] %v1116
        %1149 = vst [vmem:[#allocation2 + $0x48] sm:$0xff] %v1117
        %1150 = vst [vmem:[#allocation2 + $0x50] sm:$0xff] %v1118
        %1151 = vst [vmem:[#allocation2 + $0x58] sm:$0xff] %v1119
        %1152 = vst [vmem:[#allocation2 + $0x60] sm:$0xff] %v1120
        %1153 = vst [vmem:[#allocation2 + $0x68] sm:$0xff] %v1121
        %1154 = vst [vmem:[#allocation2 + $0x70] sm:$0xff] %v1122
        %1155 = vst [vmem:[#allocation2 + $0x78] sm:$0xff] %v1123
        %1156 = vst [vmem:[#allocation2 + $0x80] sm:$0xff] %v1124
        %1157 = vst [vmem:[#allocation2 + $0x88] sm:$0xff] %v1125
        %1158 = vst [vmem:[#allocation2 + $0x90] sm:$0xff] %v1126
        %1159 = vst [vmem:[#allocation2 + $0x98] sm:$0xff] %v1127
        %1160 = vst [vmem:[#allocation2 + $0xa0] sm:$0xff] %v1128
        %1161 = vst [vmem:[#allocation2 + $0xa8] sm:$0xff] %v1129
        %1162 = vst [vmem:[#allocation2 + $0xb0] sm:$0xff] %v1130
        %1163 = vst [vmem:[#allocation2 + $0xb8] sm:$0xff] %v1131
        %1164 = vst [vmem:[#allocation2 + $0xc0] sm:$0xff] %v1132
        %1165 = vst [vmem:[#allocation2 + $0xc8] sm:$0xff] %v1133
        %1166 = vst [vmem:[#allocation2 + $0xd0] sm:$0xff] %v1134
        %1167 = vst [vmem:[#allocation2 + $0xd8] sm:$0xff] %v1135
        %1168 = vst [vmem:[#allocation2 + $0xe0] sm:$0xff] %v1136
        %1169 = vst [vmem:[#allocation2 + $0xe8] sm:$0xff] %v1137
        %1170 = vst [vmem:[#allocation2 + $0xf0] sm:$0xff] %v1138
        %1171 = vst [vmem:[#allocation2 + $0xf8] sm:$0xff] %v1139
        %v1172 = vld [vmem:[#allocation3] sm:$0xff]
        %v1173 = vld [vmem:[#allocation3 + $0x8] sm:$0xff]
        %v1174 = vld [vmem:[#allocation3 + $0x10] sm:$0xff]
        %v1175 = vld [vmem:[#allocation3 + $0x18] sm:$0xff]
        %v1176 = vld [vmem:[#allocation3 + $0x20] sm:$0xff]
        %v1177 = vld [vmem:[#allocation3 + $0x28] sm:$0xff]
        %v1178 = vld [vmem:[#allocation3 + $0x30] sm:$0xff]
        %v1179 = vld [vmem:[#allocation3 + $0x38] sm:$0xff]
        %v1180 = vld [vmem:[#allocation3 + $0x40] sm:$0xff]
        %v1181 = vld [vmem:[#allocation3 + $0x48] sm:$0xff]
        %v1182 = vld [vmem:[#allocation3 + $0x50] sm:$0xff]
        %v1183 = vld [vmem:[#allocation3 + $0x58] sm:$0xff]
        %v1184 = vld [vmem:[#allocation3 + $0x60] sm:$0xff]
        %v1185 = vld [vmem:[#allocation3 + $0x68] sm:$0xff]
        %v1186 = vld [vmem:[#allocation3 + $0x70] sm:$0xff]
        %v1187 = vld [vmem:[#allocation3 + $0x78] sm:$0xff]
        %v1188 = vld [vmem:[#allocation3 + $0x80] sm:$0xff]
        %v1189 = vld [vmem:[#allocation3 + $0x88] sm:$0xff]
        %v1190 = vld [vmem:[#allocation3 + $0x90] sm:$0xff]
        %v1191 = vld [vmem:[#allocation3 + $0x98] sm:$0xff]
        %v1192 = vld [vmem:[#allocation3 + $0xa0] sm:$0xff]
        %v1193 = vld [vmem:[#allocation3 + $0xa8] sm:$0xff]
        %v1194 = vld [vmem:[#allocation3 + $0xb0] sm:$0xff]
        %v1195 = vld [vmem:[#allocation3 + $0xb8] sm:$0xff]
        %v1196 = vld [vmem:[#allocation3 + $0xc0] sm:$0xff]
        %v1197 = vld [vmem:[#allocation3 + $0xc8] sm:$0xff]
        %v1198 = vld [vmem:[#allocation3 + $0xd0] sm:$0xff]
        %v1199 = vld [vmem:[#allocation3 + $0xd8] sm:$0xff]
        %v1200 = vld [vmem:[#allocation3 + $0xe0] sm:$0xff]
        %v1201 = vld [vmem:[#allocation3 + $0xe8] sm:$0xff]
        %v1202 = vld [vmem:[#allocation3 + $0xf0] sm:$0xff]
        %v1203 = vld [vmem:[#allocation3 + $0xf8] sm:$0xff]
        %v1204 = vld [vmem:[%s465] sm:$0xff]
        %v1205 = vld [vmem:[%s465 + $0x8] sm:$0xff]
        %v1206 = vld [vmem:[%s465 + $0x10] sm:$0xff]
        %v1207 = vld [vmem:[%s465 + $0x18] sm:$0xff]
        %v1208 = vld [vmem:[%s465 + $0x20] sm:$0xff]
        %v1209 = vld [vmem:[%s465 + $0x28] sm:$0xff]
        %v1210 = vld [vmem:[%s465 + $0x30] sm:$0xff]
        %v1211 = vld [vmem:[%s465 + $0x38] sm:$0xff]
        %v1212 = vld [vmem:[%s465 + $0x40] sm:$0xff]
        %v1213 = vld [vmem:[%s465 + $0x48] sm:$0xff]
        %v1214 = vld [vmem:[%s465 + $0x50] sm:$0xff]
        %v1215 = vld [vmem:[%s465 + $0x58] sm:$0xff]
        %v1216 = vld [vmem:[%s465 + $0x60] sm:$0xff]
        %v1217 = vld [vmem:[%s465 + $0x68] sm:$0xff]
        %v1218 = vld [vmem:[%s465 + $0x70] sm:$0xff]
        %v1219 = vld [vmem:[%s465 + $0x78] sm:$0xff]
        %v1220 = vld [vmem:[%s465 + $0x80] sm:$0xff]
        %v1221 = vld [vmem:[%s465 + $0x88] sm:$0xff]
        %v1222 = vld [vmem:[%s465 + $0x90] sm:$0xff]
        %v1223 = vld [vmem:[%s465 + $0x98] sm:$0xff]
        %v1224 = vld [vmem:[%s465 + $0xa0] sm:$0xff]
        %v1225 = vld [vmem:[%s465 + $0xa8] sm:$0xff]
        %v1226 = vld [vmem:[%s465 + $0xb0] sm:$0xff]
        %v1227 = vld [vmem:[%s465 + $0xb8] sm:$0xff]
        %v1228 = vld [vmem:[%s465 + $0xc0] sm:$0xff]
        %v1229 = vld [vmem:[%s465 + $0xc8] sm:$0xff]
        %v1230 = vld [vmem:[%s465 + $0xd0] sm:$0xff]
        %v1231 = vld [vmem:[%s465 + $0xd8] sm:$0xff]
        %v1232 = vld [vmem:[%s465 + $0xe0] sm:$0xff]
        %v1233 = vld [vmem:[%s465 + $0xe8] sm:$0xff]
        %v1234 = vld [vmem:[%s465 + $0xf0] sm:$0xff]
        %v1235 = vld [vmem:[%s465 + $0xf8] sm:$0xff]
        %v1268 = vunpack.c.l.b16 %v1204
        %v1269 = vunpack.c.h.b16 %v1204
        %v1270 = vunpack.c.l.b16 %v1205
        %v1271 = vunpack.c.h.b16 %v1205
        %v1272 = vunpack.c.l.b16 %v1206
        %v1273 = vunpack.c.h.b16 %v1206
        %v1274 = vunpack.c.l.b16 %v1207
        %v1275 = vunpack.c.h.b16 %v1207
        %v1276 = vunpack.c.l.b16 %v1208
        %v1277 = vunpack.c.h.b16 %v1208
        %v1278 = vunpack.c.l.b16 %v1209
        %v1279 = vunpack.c.h.b16 %v1209
        %v1280 = vunpack.c.l.b16 %v1210
        %v1281 = vunpack.c.h.b16 %v1210
        %v1282 = vunpack.c.l.b16 %v1211
        %v1283 = vunpack.c.h.b16 %v1211
        %v1284 = vunpack.c.l.b16 %v1212
        %v1285 = vunpack.c.h.b16 %v1212
        %v1286 = vunpack.c.l.b16 %v1213
        %v1287 = vunpack.c.h.b16 %v1213
        %v1288 = vunpack.c.l.b16 %v1214
        %v1289 = vunpack.c.h.b16 %v1214
        %v1290 = vunpack.c.l.b16 %v1215
        %v1291 = vunpack.c.h.b16 %v1215
        %v1292 = vunpack.c.l.b16 %v1216
        %v1293 = vunpack.c.h.b16 %v1216
        %v1294 = vunpack.c.l.b16 %v1217
        %v1295 = vunpack.c.h.b16 %v1217
        %v1296 = vunpack.c.l.b16 %v1218
        %v1297 = vunpack.c.h.b16 %v1218
        %v1298 = vunpack.c.l.b16 %v1219
        %v1299 = vunpack.c.h.b16 %v1219
        %v1300 = vunpack.c.l.b16 %v1220
        %v1301 = vunpack.c.h.b16 %v1220
        %v1302 = vunpack.c.l.b16 %v1221
        %v1303 = vunpack.c.h.b16 %v1221
        %v1304 = vunpack.c.l.b16 %v1222
        %v1305 = vunpack.c.h.b16 %v1222
        %v1306 = vunpack.c.l.b16 %v1223
        %v1307 = vunpack.c.h.b16 %v1223
        %v1308 = vunpack.c.l.b16 %v1224
        %v1309 = vunpack.c.h.b16 %v1224
        %v1310 = vunpack.c.l.b16 %v1225
        %v1311 = vunpack.c.h.b16 %v1225
        %v1312 = vunpack.c.l.b16 %v1226
        %v1313 = vunpack.c.h.b16 %v1226
        %v1314 = vunpack.c.l.b16 %v1227
        %v1315 = vunpack.c.h.b16 %v1227
        %v1316 = vunpack.c.l.b16 %v1228
        %v1317 = vunpack.c.h.b16 %v1228
        %v1318 = vunpack.c.l.b16 %v1229
        %v1319 = vunpack.c.h.b16 %v1229
        %v1320 = vunpack.c.l.b16 %v1230
        %v1321 = vunpack.c.h.b16 %v1230
        %v1322 = vunpack.c.l.b16 %v1231
        %v1323 = vunpack.c.h.b16 %v1231
        %v1324 = vunpack.c.l.b16 %v1232
        %v1325 = vunpack.c.h.b16 %v1232
        %v1326 = vunpack.c.l.b16 %v1233
        %v1327 = vunpack.c.h.b16 %v1233
        %v1328 = vunpack.c.l.b16 %v1234
        %v1329 = vunpack.c.h.b16 %v1234
        %v1330 = vunpack.c.l.b16 %v1235
        %v1331 = vunpack.c.h.b16 %v1235
        %v1332 = vpack.c.b16 %v1270, %v1268
        %v1333 = vpack.c.b16 %v1271, %v1269
        %v1334 = vpack.c.b16 %v1274, %v1272
        %v1335 = vpack.c.b16 %v1275, %v1273
        %v1336 = vpack.c.b16 %v1278, %v1276
        %v1337 = vpack.c.b16 %v1279, %v1277
        %v1338 = vpack.c.b16 %v1282, %v1280
        %v1339 = vpack.c.b16 %v1283, %v1281
        %v1340 = vpack.c.b16 %v1286, %v1284
        %v1341 = vpack.c.b16 %v1287, %v1285
        %v1342 = vpack.c.b16 %v1290, %v1288
        %v1343 = vpack.c.b16 %v1291, %v1289
        %v1344 = vpack.c.b16 %v1294, %v1292
        %v1345 = vpack.c.b16 %v1295, %v1293
        %v1346 = vpack.c.b16 %v1298, %v1296
        %v1347 = vpack.c.b16 %v1299, %v1297
        %v1348 = vpack.c.b16 %v1302, %v1300
        %v1349 = vpack.c.b16 %v1303, %v1301
        %v1350 = vpack.c.b16 %v1306, %v1304
        %v1351 = vpack.c.b16 %v1307, %v1305
        %v1352 = vpack.c.b16 %v1310, %v1308
        %v1353 = vpack.c.b16 %v1311, %v1309
        %v1354 = vpack.c.b16 %v1314, %v1312
        %v1355 = vpack.c.b16 %v1315, %v1313
        %v1356 = vpack.c.b16 %v1318, %v1316
        %v1357 = vpack.c.b16 %v1319, %v1317
        %v1358 = vpack.c.b16 %v1322, %v1320
        %v1359 = vpack.c.b16 %v1323, %v1321
        %v1360 = vpack.c.b16 %v1326, %v1324
        %v1361 = vpack.c.b16 %v1327, %v1325
        %v1362 = vpack.c.b16 %v1330, %v1328
        %v1363 = vpack.c.b16 %v1331, %v1329
        %1396 = vmatpush.bf16.msra.mxu0 %v905
        %1397 = vmatpush.bf16.msra.mxu0 %v904
        %1398 = vmatpush.bf16.msra.mxu0 %v903
        %1399 = vmatpush.bf16.msra.mxu0 %v902
        %1400 = vmatpush.bf16.msra.mxu0 %v901
        %1401 = vmatpush.bf16.msra.mxu0 %v900
        %1402 = vmatpush.bf16.msra.mxu0 %v899
        %1403 = vmatpush.bf16.msra.mxu0 %v898
        %1404 = vmatmul.bf16.gmra.mxu0 %v1332
        %v1405 = vpop.f32.mrf.mxu0
        %v1406 = vadd.f32 0.0, %v1405
        %v1407 = vpop.f32.mrf.mxu0
        %v1408 = vadd.f32 0.0, %v1407
        %1409 = vmatmul.bf16.gmra.mxu0 %v1334
        %v1410 = vpop.f32.mrf.mxu0
        %v1411 = vadd.f32 0.0, %v1410
        %v1412 = vpop.f32.mrf.mxu0
        %v1413 = vadd.f32 0.0, %v1412
        %1414 = vmatmul.bf16.gmra.mxu0 %v1336
        %v1415 = vpop.f32.mrf.mxu0
        %v1416 = vadd.f32 0.0, %v1415
        %v1417 = vpop.f32.mrf.mxu0
        %v1418 = vadd.f32 0.0, %v1417
        %1419 = vmatmul.bf16.gmra.mxu0 %v1338
        %v1420 = vpop.f32.mrf.mxu0
        %v1421 = vadd.f32 0.0, %v1420
        %v1422 = vpop.f32.mrf.mxu0
        %v1423 = vadd.f32 0.0, %v1422
        %1424 = vmatmul.bf16.gmra.mxu0 %v1340
        %v1425 = vpop.f32.mrf.mxu0
        %v1426 = vadd.f32 0.0, %v1425
        %v1427 = vpop.f32.mrf.mxu0
        %v1428 = vadd.f32 0.0, %v1427
        %1429 = vmatmul.bf16.gmra.mxu0 %v1342
        %v1430 = vpop.f32.mrf.mxu0
        %v1431 = vadd.f32 0.0, %v1430
        %v1432 = vpop.f32.mrf.mxu0
        %v1433 = vadd.f32 0.0, %v1432
        %1434 = vmatmul.bf16.gmra.mxu0 %v1344
        %v1435 = vpop.f32.mrf.mxu0
        %v1436 = vadd.f32 0.0, %v1435
        %v1437 = vpop.f32.mrf.mxu0
        %v1438 = vadd.f32 0.0, %v1437
        %1439 = vmatmul.bf16.gmra.mxu0 %v1346
        %v1440 = vpop.f32.mrf.mxu0
        %v1441 = vadd.f32 0.0, %v1440
        %v1442 = vpop.f32.mrf.mxu0
        %v1443 = vadd.f32 0.0, %v1442
        %1444 = vmatmul.bf16.gmra.mxu0 %v1348
        %v1445 = vpop.f32.mrf.mxu0
        %v1446 = vadd.f32 0.0, %v1445
        %v1447 = vpop.f32.mrf.mxu0
        %v1448 = vadd.f32 0.0, %v1447
        %1449 = vmatmul.bf16.gmra.mxu0 %v1350
        %v1450 = vpop.f32.mrf.mxu0
        %v1451 = vadd.f32 0.0, %v1450
        %v1452 = vpop.f32.mrf.mxu0
        %v1453 = vadd.f32 0.0, %v1452
        %1454 = vmatmul.bf16.gmra.mxu0 %v1352
        %v1455 = vpop.f32.mrf.mxu0
        %v1456 = vadd.f32 0.0, %v1455
        %v1457 = vpop.f32.mrf.mxu0
        %v1458 = vadd.f32 0.0, %v1457
        %1459 = vmatmul.bf16.gmra.mxu0 %v1354
        %v1460 = vpop.f32.mrf.mxu0
        %v1461 = vadd.f32 0.0, %v1460
        %v1462 = vpop.f32.mrf.mxu0
        %v1463 = vadd.f32 0.0, %v1462
        %1464 = vmatmul.bf16.gmra.mxu0 %v1356
        %v1465 = vpop.f32.mrf.mxu0
        %v1466 = vadd.f32 0.0, %v1465
        %v1467 = vpop.f32.mrf.mxu0
        %v1468 = vadd.f32 0.0, %v1467
        %1469 = vmatmul.bf16.gmra.mxu0 %v1358
        %v1470 = vpop.f32.mrf.mxu0
        %v1471 = vadd.f32 0.0, %v1470
        %v1472 = vpop.f32.mrf.mxu0
        %v1473 = vadd.f32 0.0, %v1472
        %1474 = vmatmul.bf16.gmra.mxu0 %v1360
        %v1475 = vpop.f32.mrf.mxu0
        %v1476 = vadd.f32 0.0, %v1475
        %v1477 = vpop.f32.mrf.mxu0
        %v1478 = vadd.f32 0.0, %v1477
        %1479 = vmatmul.bf16.gmra.mxu0 %v1362
        %v1480 = vpop.f32.mrf.mxu0
        %v1481 = vadd.f32 0.0, %v1480
        %v1482 = vpop.f32.mrf.mxu0
        %v1483 = vadd.f32 0.0, %v1482
        %1484 = vdwg.mxu0
        %1485 = vmatpush.bf16.msra.mxu0 %v913
        %1486 = vmatpush.bf16.msra.mxu0 %v912
        %1487 = vmatpush.bf16.msra.mxu0 %v911
        %1488 = vmatpush.bf16.msra.mxu0 %v910
        %1489 = vmatpush.bf16.msra.mxu0 %v909
        %1490 = vmatpush.bf16.msra.mxu0 %v908
        %1491 = vmatpush.bf16.msra.mxu0 %v907
        %1492 = vmatpush.bf16.msra.mxu0 %v906
        %1493 = vmatmul.bf16.gmra.mxu0 %v1333
        %v1494 = vpop.f32.mrf.mxu0
        %v1495 = vadd.f32 %v1406, %v1494
        %v1496 = vpop.f32.mrf.mxu0
        %v1497 = vadd.f32 %v1408, %v1496
        %1498 = vmatmul.bf16.gmra.mxu0 %v1335
        %v1499 = vpop.f32.mrf.mxu0
        %v1500 = vadd.f32 %v1411, %v1499
        %v1501 = vpop.f32.mrf.mxu0
        %v1502 = vadd.f32 %v1413, %v1501
        %1503 = vmatmul.bf16.gmra.mxu0 %v1337
        %v1504 = vpop.f32.mrf.mxu0
        %v1505 = vadd.f32 %v1416, %v1504
        %v1506 = vpop.f32.mrf.mxu0
        %v1507 = vadd.f32 %v1418, %v1506
        %1508 = vmatmul.bf16.gmra.mxu0 %v1339
        %v1509 = vpop.f32.mrf.mxu0
        %v1510 = vadd.f32 %v1421, %v1509
        %v1511 = vpop.f32.mrf.mxu0
        %v1512 = vadd.f32 %v1423, %v1511
        %1513 = vmatmul.bf16.gmra.mxu0 %v1341
        %v1514 = vpop.f32.mrf.mxu0
        %v1515 = vadd.f32 %v1426, %v1514
        %v1516 = vpop.f32.mrf.mxu0
        %v1517 = vadd.f32 %v1428, %v1516
        %1518 = vmatmul.bf16.gmra.mxu0 %v1343
        %v1519 = vpop.f32.mrf.mxu0
        %v1520 = vadd.f32 %v1431, %v1519
        %v1521 = vpop.f32.mrf.mxu0
        %v1522 = vadd.f32 %v1433, %v1521
        %1523 = vmatmul.bf16.gmra.mxu0 %v1345
        %v1524 = vpop.f32.mrf.mxu0
        %v1525 = vadd.f32 %v1436, %v1524
        %v1526 = vpop.f32.mrf.mxu0
        %v1527 = vadd.f32 %v1438, %v1526
        %1528 = vmatmul.bf16.gmra.mxu0 %v1347
        %v1529 = vpop.f32.mrf.mxu0
        %v1530 = vadd.f32 %v1441, %v1529
        %v1531 = vpop.f32.mrf.mxu0
        %v1532 = vadd.f32 %v1443, %v1531
        %1533 = vmatmul.bf16.gmra.mxu0 %v1349
        %v1534 = vpop.f32.mrf.mxu0
        %v1535 = vadd.f32 %v1446, %v1534
        %v1536 = vpop.f32.mrf.mxu0
        %v1537 = vadd.f32 %v1448, %v1536
        %1538 = vmatmul.bf16.gmra.mxu0 %v1351
        %v1539 = vpop.f32.mrf.mxu0
        %v1540 = vadd.f32 %v1451, %v1539
        %v1541 = vpop.f32.mrf.mxu0
        %v1542 = vadd.f32 %v1453, %v1541
        %1543 = vmatmul.bf16.gmra.mxu0 %v1353
        %v1544 = vpop.f32.mrf.mxu0
        %v1545 = vadd.f32 %v1456, %v1544
        %v1546 = vpop.f32.mrf.mxu0
        %v1547 = vadd.f32 %v1458, %v1546
        %1548 = vmatmul.bf16.gmra.mxu0 %v1355
        %v1549 = vpop.f32.mrf.mxu0
        %v1550 = vadd.f32 %v1461, %v1549
        %v1551 = vpop.f32.mrf.mxu0
        %v1552 = vadd.f32 %v1463, %v1551
        %1553 = vmatmul.bf16.gmra.mxu0 %v1357
        %v1554 = vpop.f32.mrf.mxu0
        %v1555 = vadd.f32 %v1466, %v1554
        %v1556 = vpop.f32.mrf.mxu0
        %v1557 = vadd.f32 %v1468, %v1556
        %1558 = vmatmul.bf16.gmra.mxu0 %v1359
        %v1559 = vpop.f32.mrf.mxu0
        %v1560 = vadd.f32 %v1471, %v1559
        %v1561 = vpop.f32.mrf.mxu0
        %v1562 = vadd.f32 %v1473, %v1561
        %1563 = vmatmul.bf16.gmra.mxu0 %v1361
        %v1564 = vpop.f32.mrf.mxu0
        %v1565 = vadd.f32 %v1476, %v1564
        %v1566 = vpop.f32.mrf.mxu0
        %v1567 = vadd.f32 %v1478, %v1566
        %1568 = vmatmul.bf16.gmra.mxu0 %v1363
        %v1569 = vpop.f32.mrf.mxu0
        %v1570 = vadd.f32 %v1481, %v1569
        %v1571 = vpop.f32.mrf.mxu0
        %v1572 = vadd.f32 %v1483, %v1571
        %1573 = vdwg.mxu0
        %v1574 = vadd.f32 %v1172, %v1495
        %v1575 = vadd.f32 %v1173, %v1497
        %v1576 = vadd.f32 %v1174, %v1500
        %v1577 = vadd.f32 %v1175, %v1502
        %v1578 = vadd.f32 %v1176, %v1505
        %v1579 = vadd.f32 %v1177, %v1507
        %v1580 = vadd.f32 %v1178, %v1510
        %v1581 = vadd.f32 %v1179, %v1512
        %v1582 = vadd.f32 %v1180, %v1515
        %v1583 = vadd.f32 %v1181, %v1517
        %v1584 = vadd.f32 %v1182, %v1520
        %v1585 = vadd.f32 %v1183, %v1522
        %v1586 = vadd.f32 %v1184, %v1525
        %v1587 = vadd.f32 %v1185, %v1527
        %v1588 = vadd.f32 %v1186, %v1530
        %v1589 = vadd.f32 %v1187, %v1532
        %v1590 = vadd.f32 %v1188, %v1535
        %v1591 = vadd.f32 %v1189, %v1537
        %v1592 = vadd.f32 %v1190, %v1540
        %v1593 = vadd.f32 %v1191, %v1542
        %v1594 = vadd.f32 %v1192, %v1545
        %v1595 = vadd.f32 %v1193, %v1547
        %v1596 = vadd.f32 %v1194, %v1550
        %v1597 = vadd.f32 %v1195, %v1552
        %v1598 = vadd.f32 %v1196, %v1555
        %v1599 = vadd.f32 %v1197, %v1557
        %v1600 = vadd.f32 %v1198, %v1560
        %v1601 = vadd.f32 %v1199, %v1562
        %v1602 = vadd.f32 %v1200, %v1565
        %v1603 = vadd.f32 %v1201, %v1567
        %v1604 = vadd.f32 %v1202, %v1570
        %v1605 = vadd.f32 %v1203, %v1572
        %1606 = vst [vmem:[#allocation3] sm:$0xff] %v1574
        %1607 = vst [vmem:[#allocation3 + $0x8] sm:$0xff] %v1575
        %1608 = vst [vmem:[#allocation3 + $0x10] sm:$0xff] %v1576
        %1609 = vst [vmem:[#allocation3 + $0x18] sm:$0xff] %v1577
        %1610 = vst [vmem:[#allocation3 + $0x20] sm:$0xff] %v1578
        %1611 = vst [vmem:[#allocation3 + $0x28] sm:$0xff] %v1579
        %1612 = vst [vmem:[#allocation3 + $0x30] sm:$0xff] %v1580
        %1613 = vst [vmem:[#allocation3 + $0x38] sm:$0xff] %v1581
        %1614 = vst [vmem:[#allocation3 + $0x40] sm:$0xff] %v1582
        %1615 = vst [vmem:[#allocation3 + $0x48] sm:$0xff] %v1583
        %1616 = vst [vmem:[#allocation3 + $0x50] sm:$0xff] %v1584
        %1617 = vst [vmem:[#allocation3 + $0x58] sm:$0xff] %v1585
        %1618 = vst [vmem:[#allocation3 + $0x60] sm:$0xff] %v1586
        %1619 = vst [vmem:[#allocation3 + $0x68] sm:$0xff] %v1587
        %1620 = vst [vmem:[#allocation3 + $0x70] sm:$0xff] %v1588
        %1621 = vst [vmem:[#allocation3 + $0x78] sm:$0xff] %v1589
        %1622 = vst [vmem:[#allocation3 + $0x80] sm:$0xff] %v1590
        %1623 = vst [vmem:[#allocation3 + $0x88] sm:$0xff] %v1591
        %1624 = vst [vmem:[#allocation3 + $0x90] sm:$0xff] %v1592
        %1625 = vst [vmem:[#allocation3 + $0x98] sm:$0xff] %v1593
        %1626 = vst [vmem:[#allocation3 + $0xa0] sm:$0xff] %v1594
        %1627 = vst [vmem:[#allocation3 + $0xa8] sm:$0xff] %v1595
        %1628 = vst [vmem:[#allocation3 + $0xb0] sm:$0xff] %v1596
        %1629 = vst [vmem:[#allocation3 + $0xb8] sm:$0xff] %v1597
        %1630 = vst [vmem:[#allocation3 + $0xc0] sm:$0xff] %v1598
        %1631 = vst [vmem:[#allocation3 + $0xc8] sm:$0xff] %v1599
        %1632 = vst [vmem:[#allocation3 + $0xd0] sm:$0xff] %v1600
        %1633 = vst [vmem:[#allocation3 + $0xd8] sm:$0xff] %v1601
        %1634 = vst [vmem:[#allocation3 + $0xe0] sm:$0xff] %v1602
        %1635 = vst [vmem:[#allocation3 + $0xe8] sm:$0xff] %v1603
        %1636 = vst [vmem:[#allocation3 + $0xf0] sm:$0xff] %v1604
        %1637 = vst [vmem:[#allocation3 + $0xf8] sm:$0xff] %v1605
        %p1638 = scmp.eq.s32.totalorder %s21, 1
        // Predicated region
        $region106: #{gnn_layer.1} parent=92 // pred_check
          %p1639 = pneg %p1638
        $region107: #{gnn_layer.1} parent=92 // pred_check_branch
          %1641 = sbr.rel (%p1639) target = $region109
        $region108: #{gnn_layer.1} parent=92 // pred_region
          %v1642 = vld [vmem:[#allocation2] sm:$0xff]
          %v1643 = vld [vmem:[#allocation2 + $0x8] sm:$0xff]
          %v1644 = vld [vmem:[#allocation2 + $0x10] sm:$0xff]
          %v1645 = vld [vmem:[#allocation2 + $0x18] sm:$0xff]
          %v1646 = vld [vmem:[#allocation2 + $0x20] sm:$0xff]
          %v1647 = vld [vmem:[#allocation2 + $0x28] sm:$0xff]
          %v1648 = vld [vmem:[#allocation2 + $0x30] sm:$0xff]
          %v1649 = vld [vmem:[#allocation2 + $0x38] sm:$0xff]
          %v1650 = vld [vmem:[#allocation2 + $0x40] sm:$0xff]
          %v1651 = vld [vmem:[#allocation2 + $0x48] sm:$0xff]
          %v1652 = vld [vmem:[#allocation2 + $0x50] sm:$0xff]
          %v1653 = vld [vmem:[#allocation2 + $0x58] sm:$0xff]
          %v1654 = vld [vmem:[#allocation2 + $0x60] sm:$0xff]
          %v1655 = vld [vmem:[#allocation2 + $0x68] sm:$0xff]
          %v1656 = vld [vmem:[#allocation2 + $0x70] sm:$0xff]
          %v1657 = vld [vmem:[#allocation2 + $0x78] sm:$0xff]
          %v1658 = vld [vmem:[#allocation2 + $0x80] sm:$0xff]
          %v1659 = vld [vmem:[#allocation2 + $0x88] sm:$0xff]
          %v1660 = vld [vmem:[#allocation2 + $0x90] sm:$0xff]
          %v1661 = vld [vmem:[#allocation2 + $0x98] sm:$0xff]
          %v1662 = vld [vmem:[#allocation2 + $0xa0] sm:$0xff]
          %v1663 = vld [vmem:[#allocation2 + $0xa8] sm:$0xff]
          %v1664 = vld [vmem:[#allocation2 + $0xb0] sm:$0xff]
          %v1665 = vld [vmem:[#allocation2 + $0xb8] sm:$0xff]
          %v1666 = vld [vmem:[#allocation2 + $0xc0] sm:$0xff]
          %v1667 = vld [vmem:[#allocation2 + $0xc8] sm:$0xff]
          %v1668 = vld [vmem:[#allocation2 + $0xd0] sm:$0xff]
          %v1669 = vld [vmem:[#allocation2 + $0xd8] sm:$0xff]
          %v1670 = vld [vmem:[#allocation2 + $0xe0] sm:$0xff]
          %v1671 = vld [vmem:[#allocation2 + $0xe8] sm:$0xff]
          %v1672 = vld [vmem:[#allocation2 + $0xf0] sm:$0xff]
          %v1673 = vld [vmem:[#allocation2 + $0xf8] sm:$0xff]
          %v1674 = vld [vmem:[#allocation3] sm:$0xff]
          %v1675 = vld [vmem:[#allocation3 + $0x8] sm:$0xff]
          %v1676 = vld [vmem:[#allocation3 + $0x10] sm:$0xff]
          %v1677 = vld [vmem:[#allocation3 + $0x18] sm:$0xff]
          %v1678 = vld [vmem:[#allocation3 + $0x20] sm:$0xff]
          %v1679 = vld [vmem:[#allocation3 + $0x28] sm:$0xff]
          %v1680 = vld [vmem:[#allocation3 + $0x30] sm:$0xff]
          %v1681 = vld [vmem:[#allocation3 + $0x38] sm:$0xff]
          %v1682 = vld [vmem:[#allocation3 + $0x40] sm:$0xff]
          %v1683 = vld [vmem:[#allocation3 + $0x48] sm:$0xff]
          %v1684 = vld [vmem:[#allocation3 + $0x50] sm:$0xff]
          %v1685 = vld [vmem:[#allocation3 + $0x58] sm:$0xff]
          %v1686 = vld [vmem:[#allocation3 + $0x60] sm:$0xff]
          %v1687 = vld [vmem:[#allocation3 + $0x68] sm:$0xff]
          %v1688 = vld [vmem:[#allocation3 + $0x70] sm:$0xff]
          %v1689 = vld [vmem:[#allocation3 + $0x78] sm:$0xff]
          %v1690 = vld [vmem:[#allocation3 + $0x80] sm:$0xff]
          %v1691 = vld [vmem:[#allocation3 + $0x88] sm:$0xff]
          %v1692 = vld [vmem:[#allocation3 + $0x90] sm:$0xff]
          %v1693 = vld [vmem:[#allocation3 + $0x98] sm:$0xff]
          %v1694 = vld [vmem:[#allocation3 + $0xa0] sm:$0xff]
          %v1695 = vld [vmem:[#allocation3 + $0xa8] sm:$0xff]
          %v1696 = vld [vmem:[#allocation3 + $0xb0] sm:$0xff]
          %v1697 = vld [vmem:[#allocation3 + $0xb8] sm:$0xff]
          %v1698 = vld [vmem:[#allocation3 + $0xc0] sm:$0xff]
          %v1699 = vld [vmem:[#allocation3 + $0xc8] sm:$0xff]
          %v1700 = vld [vmem:[#allocation3 + $0xd0] sm:$0xff]
          %v1701 = vld [vmem:[#allocation3 + $0xd8] sm:$0xff]
          %v1702 = vld [vmem:[#allocation3 + $0xe0] sm:$0xff]
          %v1703 = vld [vmem:[#allocation3 + $0xe8] sm:$0xff]
          %v1704 = vld [vmem:[#allocation3 + $0xf0] sm:$0xff]
          %v1705 = vld [vmem:[#allocation3 + $0xf8] sm:$0xff]
          %vm1706 = vcmp.gt.f32.partialorder %v1642, 0.0
          %vm1707 = vcmp.gt.f32.partialorder %v1643, 0.0
          %vm1708 = vcmp.gt.f32.partialorder %v1644, 0.0
          %vm1709 = vcmp.gt.f32.partialorder %v1645, 0.0
          %vm1710 = vcmp.gt.f32.partialorder %v1646, 0.0
          %vm1711 = vcmp.gt.f32.partialorder %v1647, 0.0
          %vm1712 = vcmp.gt.f32.partialorder %v1648, 0.0
          %vm1713 = vcmp.gt.f32.partialorder %v1649, 0.0
          %vm1714 = vcmp.gt.f32.partialorder %v1650, 0.0
          %vm1715 = vcmp.gt.f32.partialorder %v1651, 0.0
          %vm1716 = vcmp.gt.f32.partialorder %v1652, 0.0
          %vm1717 = vcmp.gt.f32.partialorder %v1653, 0.0
          %vm1718 = vcmp.gt.f32.partialorder %v1654, 0.0
          %vm1719 = vcmp.gt.f32.partialorder %v1655, 0.0
          %vm1720 = vcmp.gt.f32.partialorder %v1656, 0.0
          %vm1721 = vcmp.gt.f32.partialorder %v1657, 0.0
          %vm1722 = vcmp.gt.f32.partialorder %v1658, 0.0
          %vm1723 = vcmp.gt.f32.partialorder %v1659, 0.0
          %vm1724 = vcmp.gt.f32.partialorder %v1660, 0.0
          %vm1725 = vcmp.gt.f32.partialorder %v1661, 0.0
          %vm1726 = vcmp.gt.f32.partialorder %v1662, 0.0
          %vm1727 = vcmp.gt.f32.partialorder %v1663, 0.0
          %vm1728 = vcmp.gt.f32.partialorder %v1664, 0.0
          %vm1729 = vcmp.gt.f32.partialorder %v1665, 0.0
          %vm1730 = vcmp.gt.f32.partialorder %v1666, 0.0
          %vm1731 = vcmp.gt.f32.partialorder %v1667, 0.0
          %vm1732 = vcmp.gt.f32.partialorder %v1668, 0.0
          %vm1733 = vcmp.gt.f32.partialorder %v1669, 0.0
          %vm1734 = vcmp.gt.f32.partialorder %v1670, 0.0
          %vm1735 = vcmp.gt.f32.partialorder %v1671, 0.0
          %vm1736 = vcmp.gt.f32.partialorder %v1672, 0.0
          %vm1737 = vcmp.gt.f32.partialorder %v1673, 0.0
          %v1738 = vrcp.pop %v1642
          %v1739 = vrcp.pop %v1643
          %v1740 = vrcp.pop %v1644
          %v1741 = vrcp.pop %v1645
          %v1742 = vrcp.pop %v1646
          %v1743 = vrcp.pop %v1647
          %v1744 = vrcp.pop %v1648
          %v1745 = vrcp.pop %v1649
          %v1746 = vrcp.pop %v1650
          %v1747 = vrcp.pop %v1651
          %v1748 = vrcp.pop %v1652
          %v1749 = vrcp.pop %v1653
          %v1750 = vrcp.pop %v1654
          %v1751 = vrcp.pop %v1655
          %v1752 = vrcp.pop %v1656
          %v1753 = vrcp.pop %v1657
          %v1754 = vrcp.pop %v1658
          %v1755 = vrcp.pop %v1659
          %v1756 = vrcp.pop %v1660
          %v1757 = vrcp.pop %v1661
          %v1758 = vrcp.pop %v1662
          %v1759 = vrcp.pop %v1663
          %v1760 = vrcp.pop %v1664
          %v1761 = vrcp.pop %v1665
          %v1762 = vrcp.pop %v1666
          %v1763 = vrcp.pop %v1667
          %v1764 = vrcp.pop %v1668
          %v1765 = vrcp.pop %v1669
          %v1766 = vrcp.pop %v1670
          %v1767 = vrcp.pop %v1671
          %v1768 = vrcp.pop %v1672
          %v1769 = vrcp.pop %v1673
          %v1770 = vsel %vm1706, %v1738, 0.0
          %v1771 = vsel %vm1707, %v1739, 0.0
          %v1772 = vsel %vm1708, %v1740, 0.0
          %v1773 = vsel %vm1709, %v1741, 0.0
          %v1774 = vsel %vm1710, %v1742, 0.0
          %v1775 = vsel %vm1711, %v1743, 0.0
          %v1776 = vsel %vm1712, %v1744, 0.0
          %v1777 = vsel %vm1713, %v1745, 0.0
          %v1778 = vsel %vm1714, %v1746, 0.0
          %v1779 = vsel %vm1715, %v1747, 0.0
          %v1780 = vsel %vm1716, %v1748, 0.0
          %v1781 = vsel %vm1717, %v1749, 0.0
          %v1782 = vsel %vm1718, %v1750, 0.0
          %v1783 = vsel %vm1719, %v1751, 0.0
          %v1784 = vsel %vm1720, %v1752, 0.0
          %v1785 = vsel %vm1721, %v1753, 0.0
          %v1786 = vsel %vm1722, %v1754, 0.0
          %v1787 = vsel %vm1723, %v1755, 0.0
          %v1788 = vsel %vm1724, %v1756, 0.0
          %v1789 = vsel %vm1725, %v1757, 0.0
          %v1790 = vsel %vm1726, %v1758, 0.0
          %v1791 = vsel %vm1727, %v1759, 0.0
          %v1792 = vsel %vm1728, %v1760, 0.0
          %v1793 = vsel %vm1729, %v1761, 0.0
          %v1794 = vsel %vm1730, %v1762, 0.0
          %v1795 = vsel %vm1731, %v1763, 0.0
          %v1796 = vsel %vm1732, %v1764, 0.0
          %v1797 = vsel %vm1733, %v1765, 0.0
          %v1798 = vsel %vm1734, %v1766, 0.0
          %v1799 = vsel %vm1735, %v1767, 0.0
          %v1800 = vsel %vm1736, %v1768, 0.0
          %v1801 = vsel %vm1737, %v1769, 0.0
          %1803 = vset.pattern.permute.xlu0 16
          %1804 = vperm.xlu0 %1803, %v1770
          %v1805 = vpop.permute.xlu0 %1804
          %1808 = vset.pattern.permute.xlu0 16
          %1809 = vperm.xlu0 %1808, %v1771
          %v1810 = vpop.permute.xlu0 %1809
          %1813 = vset.pattern.permute.xlu0 16
          %1814 = vperm.xlu0 %1813, %v1772
          %v1815 = vpop.permute.xlu0 %1814
          %1818 = vset.pattern.permute.xlu0 16
          %1819 = vperm.xlu0 %1818, %v1773
          %v1820 = vpop.permute.xlu0 %1819
          %1823 = vset.pattern.permute.xlu0 16
          %1824 = vperm.xlu0 %1823, %v1774
          %v1825 = vpop.permute.xlu0 %1824
          %1828 = vset.pattern.permute.xlu0 16
          %1829 = vperm.xlu0 %1828, %v1775
          %v1830 = vpop.permute.xlu0 %1829
          %1833 = vset.pattern.permute.xlu0 16
          %1834 = vperm.xlu0 %1833, %v1776
          %v1835 = vpop.permute.xlu0 %1834
          %1838 = vset.pattern.permute.xlu0 16
          %1839 = vperm.xlu0 %1838, %v1777
          %v1840 = vpop.permute.xlu0 %1839
          %1843 = vset.pattern.permute.xlu0 16
          %1844 = vperm.xlu0 %1843, %v1778
          %v1845 = vpop.permute.xlu0 %1844
          %1848 = vset.pattern.permute.xlu0 16
          %1849 = vperm.xlu0 %1848, %v1779
          %v1850 = vpop.permute.xlu0 %1849
          %1853 = vset.pattern.permute.xlu0 16
          %1854 = vperm.xlu0 %1853, %v1780
          %v1855 = vpop.permute.xlu0 %1854
          %1858 = vset.pattern.permute.xlu0 16
          %1859 = vperm.xlu0 %1858, %v1781
          %v1860 = vpop.permute.xlu0 %1859
          %1863 = vset.pattern.permute.xlu0 16
          %1864 = vperm.xlu0 %1863, %v1782
          %v1865 = vpop.permute.xlu0 %1864
          %1868 = vset.pattern.permute.xlu0 16
          %1869 = vperm.xlu0 %1868, %v1783
          %v1870 = vpop.permute.xlu0 %1869
          %1873 = vset.pattern.permute.xlu0 16
          %1874 = vperm.xlu0 %1873, %v1784
          %v1875 = vpop.permute.xlu0 %1874
          %1878 = vset.pattern.permute.xlu0 16
          %1879 = vperm.xlu0 %1878, %v1785
          %v1880 = vpop.permute.xlu0 %1879
          %1883 = vset.pattern.permute.xlu0 16
          %1884 = vperm.xlu0 %1883, %v1786
          %v1885 = vpop.permute.xlu0 %1884
          %1888 = vset.pattern.permute.xlu0 16
          %1889 = vperm.xlu0 %1888, %v1787
          %v1890 = vpop.permute.xlu0 %1889
          %1893 = vset.pattern.permute.xlu0 16
          %1894 = vperm.xlu0 %1893, %v1788
          %v1895 = vpop.permute.xlu0 %1894
          %1898 = vset.pattern.permute.xlu0 16
          %1899 = vperm.xlu0 %1898, %v1789
          %v1900 = vpop.permute.xlu0 %1899
          %1903 = vset.pattern.permute.xlu0 16
          %1904 = vperm.xlu0 %1903, %v1790
          %v1905 = vpop.permute.xlu0 %1904
          %1908 = vset.pattern.permute.xlu0 16
          %1909 = vperm.xlu0 %1908, %v1791
          %v1910 = vpop.permute.xlu0 %1909
          %1913 = vset.pattern.permute.xlu0 16
          %1914 = vperm.xlu0 %1913, %v1792
          %v1915 = vpop.permute.xlu0 %1914
          %1918 = vset.pattern.permute.xlu0 16
          %1919 = vperm.xlu0 %1918, %v1793
          %v1920 = vpop.permute.xlu0 %1919
          %1923 = vset.pattern.permute.xlu0 16
          %1924 = vperm.xlu0 %1923, %v1794
          %v1925 = vpop.permute.xlu0 %1924
          %1928 = vset.pattern.permute.xlu0 16
          %1929 = vperm.xlu0 %1928, %v1795
          %v1930 = vpop.permute.xlu0 %1929
          %1933 = vset.pattern.permute.xlu0 16
          %1934 = vperm.xlu0 %1933, %v1796
          %v1935 = vpop.permute.xlu0 %1934
          %1938 = vset.pattern.permute.xlu0 16
          %1939 = vperm.xlu0 %1938, %v1797
          %v1940 = vpop.permute.xlu0 %1939
          %1943 = vset.pattern.permute.xlu0 16
          %1944 = vperm.xlu0 %1943, %v1798
          %v1945 = vpop.permute.xlu0 %1944
          %1948 = vset.pattern.permute.xlu0 16
          %1949 = vperm.xlu0 %1948, %v1799
          %v1950 = vpop.permute.xlu0 %1949
          %1953 = vset.pattern.permute.xlu0 16
          %1954 = vperm.xlu0 %1953, %v1800
          %v1955 = vpop.permute.xlu0 %1954
          %1958 = vset.pattern.permute.xlu0 16
          %1959 = vperm.xlu0 %1958, %v1801
          %v1960 = vpop.permute.xlu0 %1959
          %v1962 = vmul.f32 %v1642, %v1805
          %v1963 = vmul.f32 %v1643, %v1810
          %v1964 = vmul.f32 %v1644, %v1815
          %v1965 = vmul.f32 %v1645, %v1820
          %v1966 = vmul.f32 %v1646, %v1825
          %v1967 = vmul.f32 %v1647, %v1830
          %v1968 = vmul.f32 %v1648, %v1835
          %v1969 = vmul.f32 %v1649, %v1840
          %v1970 = vmul.f32 %v1650, %v1845
          %v1971 = vmul.f32 %v1651, %v1850
          %v1972 = vmul.f32 %v1652, %v1855
          %v1973 = vmul.f32 %v1653, %v1860
          %v1974 = vmul.f32 %v1654, %v1865
          %v1975 = vmul.f32 %v1655, %v1870
          %v1976 = vmul.f32 %v1656, %v1875
          %v1977 = vmul.f32 %v1657, %v1880
          %v1978 = vmul.f32 %v1658, %v1885
          %v1979 = vmul.f32 %v1659, %v1890
          %v1980 = vmul.f32 %v1660, %v1895
          %v1981 = vmul.f32 %v1661, %v1900
          %v1982 = vmul.f32 %v1662, %v1905
          %v1983 = vmul.f32 %v1663, %v1910
          %v1984 = vmul.f32 %v1664, %v1915
          %v1985 = vmul.f32 %v1665, %v1920
          %v1986 = vmul.f32 %v1666, %v1925
          %v1987 = vmul.f32 %v1667, %v1930
          %v1988 = vmul.f32 %v1668, %v1935
          %v1989 = vmul.f32 %v1669, %v1940
          %v1990 = vmul.f32 %v1670, %v1945
          %v1991 = vmul.f32 %v1671, %v1950
          %v1992 = vmul.f32 %v1672, %v1955
          %v1993 = vmul.f32 %v1673, %v1960
          %v1994 = vmul.f32 %v1674, %v1805
          %v1995 = vmul.f32 %v1675, %v1810
          %v1996 = vmul.f32 %v1676, %v1815
          %v1997 = vmul.f32 %v1677, %v1820
          %v1998 = vmul.f32 %v1678, %v1825
          %v1999 = vmul.f32 %v1679, %v1830
          %v2000 = vmul.f32 %v1680, %v1835
          %v2001 = vmul.f32 %v1681, %v1840
          %v2002 = vmul.f32 %v1682, %v1845
          %v2003 = vmul.f32 %v1683, %v1850
          %v2004 = vmul.f32 %v1684, %v1855
          %v2005 = vmul.f32 %v1685, %v1860
          %v2006 = vmul.f32 %v1686, %v1865
          %v2007 = vmul.f32 %v1687, %v1870
          %v2008 = vmul.f32 %v1688, %v1875
          %v2009 = vmul.f32 %v1689, %v1880
          %v2010 = vmul.f32 %v1690, %v1885
          %v2011 = vmul.f32 %v1691, %v1890
          %v2012 = vmul.f32 %v1692, %v1895
          %v2013 = vmul.f32 %v1693, %v1900
          %v2014 = vmul.f32 %v1694, %v1905
          %v2015 = vmul.f32 %v1695, %v1910
          %v2016 = vmul.f32 %v1696, %v1915
          %v2017 = vmul.f32 %v1697, %v1920
          %v2018 = vmul.f32 %v1698, %v1925
          %v2019 = vmul.f32 %v1699, %v1930
          %v2020 = vmul.f32 %v1700, %v1935
          %v2021 = vmul.f32 %v1701, %v1940
          %v2022 = vmul.f32 %v1702, %v1945
          %v2023 = vmul.f32 %v1703, %v1950
          %v2024 = vmul.f32 %v1704, %v1955
          %v2025 = vmul.f32 %v1705, %v1960
          %v2026 = vld [vmem:[%s518] sm:$0xf]
          %v2027 = vld [vmem:[%s518 + $0x4] sm:$0xf]
          %v2028 = vld [vmem:[%s518 + $0x8] sm:$0xf]
          %v2029 = vld [vmem:[%s518 + $0xc] sm:$0xf]
          %v2030 = vld [vmem:[%s518 + $0x10] sm:$0xf]
          %v2031 = vld [vmem:[%s518 + $0x14] sm:$0xf]
          %v2032 = vld [vmem:[%s518 + $0x18] sm:$0xf]
          %v2033 = vld [vmem:[%s518 + $0x1c] sm:$0xf]
          %v2034 = vld [vmem:[%s518 + $0x20] sm:$0xf]
          %v2035 = vld [vmem:[%s518 + $0x24] sm:$0xf]
          %v2036 = vld [vmem:[%s518 + $0x28] sm:$0xf]
          %v2037 = vld [vmem:[%s518 + $0x2c] sm:$0xf]
          %v2038 = vld [vmem:[%s518 + $0x30] sm:$0xf]
          %v2039 = vld [vmem:[%s518 + $0x34] sm:$0xf]
          %v2040 = vld [vmem:[%s518 + $0x38] sm:$0xf]
          %v2041 = vld [vmem:[%s518 + $0x3c] sm:$0xf]
          %v2042 = vld [vmem:[%s518 + $0x40] sm:$0xf]
          %v2043 = vld [vmem:[%s518 + $0x44] sm:$0xf]
          %v2044 = vld [vmem:[%s518 + $0x48] sm:$0xf]
          %v2045 = vld [vmem:[%s518 + $0x4c] sm:$0xf]
          %v2046 = vld [vmem:[%s518 + $0x50] sm:$0xf]
          %v2047 = vld [vmem:[%s518 + $0x54] sm:$0xf]
          %v2048 = vld [vmem:[%s518 + $0x58] sm:$0xf]
          %v2049 = vld [vmem:[%s518 + $0x5c] sm:$0xf]
          %v2050 = vld [vmem:[%s518 + $0x60] sm:$0xf]
          %v2051 = vld [vmem:[%s518 + $0x64] sm:$0xf]
          %v2052 = vld [vmem:[%s518 + $0x68] sm:$0xf]
          %v2053 = vld [vmem:[%s518 + $0x6c] sm:$0xf]
          %v2054 = vld [vmem:[%s518 + $0x70] sm:$0xf]
          %v2055 = vld [vmem:[%s518 + $0x74] sm:$0xf]
          %v2056 = vld [vmem:[%s518 + $0x78] sm:$0xf]
          %v2057 = vld [vmem:[%s518 + $0x7c] sm:$0xf]
          %v2058 = vunpack.c.l.bf16 %v2026
          %v2059 = vunpack.c.l.bf16 %v2027
          %v2060 = vunpack.c.l.bf16 %v2028
          %v2061 = vunpack.c.l.bf16 %v2029
          %v2062 = vunpack.c.l.bf16 %v2030
          %v2063 = vunpack.c.l.bf16 %v2031
          %v2064 = vunpack.c.l.bf16 %v2032
          %v2065 = vunpack.c.l.bf16 %v2033
          %v2066 = vunpack.c.l.bf16 %v2034
          %v2067 = vunpack.c.l.bf16 %v2035
          %v2068 = vunpack.c.l.bf16 %v2036
          %v2069 = vunpack.c.l.bf16 %v2037
          %v2070 = vunpack.c.l.bf16 %v2038
          %v2071 = vunpack.c.l.bf16 %v2039
          %v2072 = vunpack.c.l.bf16 %v2040
          %v2073 = vunpack.c.l.bf16 %v2041
          %v2074 = vunpack.c.l.bf16 %v2042
          %v2075 = vunpack.c.l.bf16 %v2043
          %v2076 = vunpack.c.l.bf16 %v2044
          %v2077 = vunpack.c.l.bf16 %v2045
          %v2078 = vunpack.c.l.bf16 %v2046
          %v2079 = vunpack.c.l.bf16 %v2047
          %v2080 = vunpack.c.l.bf16 %v2048
          %v2081 = vunpack.c.l.bf16 %v2049
          %v2082 = vunpack.c.l.bf16 %v2050
          %v2083 = vunpack.c.l.bf16 %v2051
          %v2084 = vunpack.c.l.bf16 %v2052
          %v2085 = vunpack.c.l.bf16 %v2053
          %v2086 = vunpack.c.l.bf16 %v2054
          %v2087 = vunpack.c.l.bf16 %v2055
          %v2088 = vunpack.c.l.bf16 %v2056
          %v2089 = vunpack.c.l.bf16 %v2057
          %v2090 = vld [vmem:[%s4] sm:$0xff]
          %v2091 = vld [vmem:[%s4 + $0x8] sm:$0xff]
          %v2092 = vld [vmem:[%s4 + $0x10] sm:$0xff]
          %v2093 = vld [vmem:[%s4 + $0x18] sm:$0xff]
          %v2094 = vld [vmem:[%s4 + $0x20] sm:$0xff]
          %v2095 = vld [vmem:[%s4 + $0x28] sm:$0xff]
          %v2096 = vld [vmem:[%s4 + $0x30] sm:$0xff]
          %v2097 = vld [vmem:[%s4 + $0x38] sm:$0xff]
          %v2098 = vld [vmem:[%s4 + $0x40] sm:$0xff]
          %v2099 = vld [vmem:[%s4 + $0x48] sm:$0xff]
          %v2100 = vld [vmem:[%s4 + $0x50] sm:$0xff]
          %v2101 = vld [vmem:[%s4 + $0x58] sm:$0xff]
          %v2102 = vld [vmem:[%s4 + $0x60] sm:$0xff]
          %v2103 = vld [vmem:[%s4 + $0x68] sm:$0xff]
          %v2104 = vld [vmem:[%s4 + $0x70] sm:$0xff]
          %v2105 = vld [vmem:[%s4 + $0x78] sm:$0xff]
          %v2106 = vld [vmem:[%s4 + $0x80] sm:$0xff]
          %v2107 = vld [vmem:[%s4 + $0x88] sm:$0xff]
          %v2108 = vld [vmem:[%s4 + $0x90] sm:$0xff]
          %v2109 = vld [vmem:[%s4 + $0x98] sm:$0xff]
          %v2110 = vld [vmem:[%s4 + $0xa0] sm:$0xff]
          %v2111 = vld [vmem:[%s4 + $0xa8] sm:$0xff]
          %v2112 = vld [vmem:[%s4 + $0xb0] sm:$0xff]
          %v2113 = vld [vmem:[%s4 + $0xb8] sm:$0xff]
          %v2114 = vld [vmem:[%s4 + $0xc0] sm:$0xff]
          %v2115 = vld [vmem:[%s4 + $0xc8] sm:$0xff]
          %v2116 = vld [vmem:[%s4 + $0xd0] sm:$0xff]
          %v2117 = vld [vmem:[%s4 + $0xd8] sm:$0xff]
          %v2118 = vld [vmem:[%s4 + $0xe0] sm:$0xff]
          %v2119 = vld [vmem:[%s4 + $0xe8] sm:$0xff]
          %v2120 = vld [vmem:[%s4 + $0xf0] sm:$0xff]
          %v2121 = vld [vmem:[%s4 + $0xf8] sm:$0xff]
          %2122 = vmatpush.msra.mxu0 %v2121
          %2123 = vmatpush.msra.mxu0 %v2120
          %2124 = vmatpush.msra.mxu0 %v2119
          %2125 = vmatpush.msra.mxu0 %v2118
          %2126 = vmatpush.msra.mxu0 %v2117
          %2127 = vmatpush.msra.mxu0 %v2116
          %2128 = vmatpush.msra.mxu0 %v2115
          %2129 = vmatpush.msra.mxu0 %v2114
          %2130 = vmatpush.msra.mxu0 %v2113
          %2131 = vmatpush.msra.mxu0 %v2112
          %2132 = vmatpush.msra.mxu0 %v2111
          %2133 = vmatpush.msra.mxu0 %v2110
          %2134 = vmatpush.msra.mxu0 %v2109
          %2135 = vmatpush.msra.mxu0 %v2108
          %2136 = vmatpush.msra.mxu0 %v2107
          %2137 = vmatpush.msra.mxu0 %v2106
          %2138 = vmatmul.f32.gmra.mxu0 %v1994
          %v2139 = vpop.f32.mrf.mxu0
          %v2140 = vadd.f32 0.0, %v2139
          %2141 = vmatmul.f32.gmra.mxu0 %v1995
          %v2142 = vpop.f32.mrf.mxu0
          %v2143 = vadd.f32 0.0, %v2142
          %2144 = vmatmul.f32.gmra.mxu0 %v1996
          %v2145 = vpop.f32.mrf.mxu0
          %v2146 = vadd.f32 0.0, %v2145
          %2147 = vmatmul.f32.gmra.mxu0 %v1997
          %v2148 = vpop.f32.mrf.mxu0
          %v2149 = vadd.f32 0.0, %v2148
          %2150 = vmatmul.f32.gmra.mxu0 %v1998
          %v2151 = vpop.f32.mrf.mxu0
          %v2152 = vadd.f32 0.0, %v2151
          %2153 = vmatmul.f32.gmra.mxu0 %v1999
          %v2154 = vpop.f32.mrf.mxu0
          %v2155 = vadd.f32 0.0, %v2154
          %2156 = vmatmul.f32.gmra.mxu0 %v2000
          %v2157 = vpop.f32.mrf.mxu0
          %v2158 = vadd.f32 0.0, %v2157
          %2159 = vmatmul.f32.gmra.mxu0 %v2001
          %v2160 = vpop.f32.mrf.mxu0
          %v2161 = vadd.f32 0.0, %v2160
          %2162 = vmatmul.f32.gmra.mxu0 %v2002
          %v2163 = vpop.f32.mrf.mxu0
          %v2164 = vadd.f32 0.0, %v2163
          %2165 = vmatmul.f32.gmra.mxu0 %v2003
          %v2166 = vpop.f32.mrf.mxu0
          %v2167 = vadd.f32 0.0, %v2166
          %2168 = vmatmul.f32.gmra.mxu0 %v2004
          %v2169 = vpop.f32.mrf.mxu0
          %v2170 = vadd.f32 0.0, %v2169
          %2171 = vmatmul.f32.gmra.mxu0 %v2005
          %v2172 = vpop.f32.mrf.mxu0
          %v2173 = vadd.f32 0.0, %v2172
          %2174 = vmatmul.f32.gmra.mxu0 %v2006
          %v2175 = vpop.f32.mrf.mxu0
          %v2176 = vadd.f32 0.0, %v2175
          %2177 = vmatmul.f32.gmra.mxu0 %v2007
          %v2178 = vpop.f32.mrf.mxu0
          %v2179 = vadd.f32 0.0, %v2178
          %2180 = vmatmul.f32.gmra.mxu0 %v2008
          %v2181 = vpop.f32.mrf.mxu0
          %v2182 = vadd.f32 0.0, %v2181
          %2183 = vmatmul.f32.gmra.mxu0 %v2009
          %v2184 = vpop.f32.mrf.mxu0
          %v2185 = vadd.f32 0.0, %v2184
          %2186 = vmatmul.f32.gmra.mxu0 %v2010
          %v2187 = vpop.f32.mrf.mxu0
          %v2188 = vadd.f32 0.0, %v2187
          %2189 = vmatmul.f32.gmra.mxu0 %v2011
          %v2190 = vpop.f32.mrf.mxu0
          %v2191 = vadd.f32 0.0, %v2190
          %2192 = vmatmul.f32.gmra.mxu0 %v2012
          %v2193 = vpop.f32.mrf.mxu0
          %v2194 = vadd.f32 0.0, %v2193
          %2195 = vmatmul.f32.gmra.mxu0 %v2013
          %v2196 = vpop.f32.mrf.mxu0
          %v2197 = vadd.f32 0.0, %v2196
          %2198 = vmatmul.f32.gmra.mxu0 %v2014
          %v2199 = vpop.f32.mrf.mxu0
          %v2200 = vadd.f32 0.0, %v2199
          %2201 = vmatmul.f32.gmra.mxu0 %v2015
          %v2202 = vpop.f32.mrf.mxu0
          %v2203 = vadd.f32 0.0, %v2202
          %2204 = vmatmul.f32.gmra.mxu0 %v2016
          %v2205 = vpop.f32.mrf.mxu0
          %v2206 = vadd.f32 0.0, %v2205
          %2207 = vmatmul.f32.gmra.mxu0 %v2017
          %v2208 = vpop.f32.mrf.mxu0
          %v2209 = vadd.f32 0.0, %v2208
          %2210 = vmatmul.f32.gmra.mxu0 %v2018
          %v2211 = vpop.f32.mrf.mxu0
          %v2212 = vadd.f32 0.0, %v2211
          %2213 = vmatmul.f32.gmra.mxu0 %v2019
          %v2214 = vpop.f32.mrf.mxu0
          %v2215 = vadd.f32 0.0, %v2214
          %2216 = vmatmul.f32.gmra.mxu0 %v2020
          %v2217 = vpop.f32.mrf.mxu0
          %v2218 = vadd.f32 0.0, %v2217
          %2219 = vmatmul.f32.gmra.mxu0 %v2021
          %v2220 = vpop.f32.mrf.mxu0
          %v2221 = vadd.f32 0.0, %v2220
          %2222 = vmatmul.f32.gmra.mxu0 %v2022
          %v2223 = vpop.f32.mrf.mxu0
          %v2224 = vadd.f32 0.0, %v2223
          %2225 = vmatmul.f32.gmra.mxu0 %v2023
          %v2226 = vpop.f32.mrf.mxu0
          %v2227 = vadd.f32 0.0, %v2226
          %2228 = vmatmul.f32.gmra.mxu0 %v2024
          %v2229 = vpop.f32.mrf.mxu0
          %v2230 = vadd.f32 0.0, %v2229
          %2231 = vmatmul.f32.gmra.mxu0 %v2025
          %v2232 = vpop.f32.mrf.mxu0
          %v2233 = vadd.f32 0.0, %v2232
          %2234 = vdwg.mxu0
          %2235 = vmatpush.msra.mxu0 %v2105
          %2236 = vmatpush.msra.mxu0 %v2104
          %2237 = vmatpush.msra.mxu0 %v2103
          %2238 = vmatpush.msra.mxu0 %v2102
          %2239 = vmatpush.msra.mxu0 %v2101
          %2240 = vmatpush.msra.mxu0 %v2100
          %2241 = vmatpush.msra.mxu0 %v2099
          %2242 = vmatpush.msra.mxu0 %v2098
          %2243 = vmatpush.msra.mxu0 %v2097
          %2244 = vmatpush.msra.mxu0 %v2096
          %2245 = vmatpush.msra.mxu0 %v2095
          %2246 = vmatpush.msra.mxu0 %v2094
          %2247 = vmatpush.msra.mxu0 %v2093
          %2248 = vmatpush.msra.mxu0 %v2092
          %2249 = vmatpush.msra.mxu0 %v2091
          %2250 = vmatpush.msra.mxu0 %v2090
          %2251 = vmatmul.f32.gmra.mxu0 %v2058
          %v2252 = vpop.f32.mrf.mxu0
          %v2253 = vadd.f32 %v2140, %v2252
          %2254 = vmatmul.f32.gmra.mxu0 %v2059
          %v2255 = vpop.f32.mrf.mxu0
          %v2256 = vadd.f32 %v2143, %v2255
          %2257 = vmatmul.f32.gmra.mxu0 %v2060
          %v2258 = vpop.f32.mrf.mxu0
          %v2259 = vadd.f32 %v2146, %v2258
          %2260 = vmatmul.f32.gmra.mxu0 %v2061
          %v2261 = vpop.f32.mrf.mxu0
          %v2262 = vadd.f32 %v2149, %v2261
          %2263 = vmatmul.f32.gmra.mxu0 %v2062
          %v2264 = vpop.f32.mrf.mxu0
          %v2265 = vadd.f32 %v2152, %v2264
          %2266 = vmatmul.f32.gmra.mxu0 %v2063
          %v2267 = vpop.f32.mrf.mxu0
          %v2268 = vadd.f32 %v2155, %v2267
          %2269 = vmatmul.f32.gmra.mxu0 %v2064
          %v2270 = vpop.f32.mrf.mxu0
          %v2271 = vadd.f32 %v2158, %v2270
          %2272 = vmatmul.f32.gmra.mxu0 %v2065
          %v2273 = vpop.f32.mrf.mxu0
          %v2274 = vadd.f32 %v2161, %v2273
          %2275 = vmatmul.f32.gmra.mxu0 %v2066
          %v2276 = vpop.f32.mrf.mxu0
          %v2277 = vadd.f32 %v2164, %v2276
          %2278 = vmatmul.f32.gmra.mxu0 %v2067
          %v2279 = vpop.f32.mrf.mxu0
          %v2280 = vadd.f32 %v2167, %v2279
          %2281 = vmatmul.f32.gmra.mxu0 %v2068
          %v2282 = vpop.f32.mrf.mxu0
          %v2283 = vadd.f32 %v2170, %v2282
          %2284 = vmatmul.f32.gmra.mxu0 %v2069
          %v2285 = vpop.f32.mrf.mxu0
          %v2286 = vadd.f32 %v2173, %v2285
          %2287 = vmatmul.f32.gmra.mxu0 %v2070
          %v2288 = vpop.f32.mrf.mxu0
          %v2289 = vadd.f32 %v2176, %v2288
          %2290 = vmatmul.f32.gmra.mxu0 %v2071
          %v2291 = vpop.f32.mrf.mxu0
          %v2292 = vadd.f32 %v2179, %v2291
          %2293 = vmatmul.f32.gmra.mxu0 %v2072
          %v2294 = vpop.f32.mrf.mxu0
          %v2295 = vadd.f32 %v2182, %v2294
          %2296 = vmatmul.f32.gmra.mxu0 %v2073
          %v2297 = vpop.f32.mrf.mxu0
          %v2298 = vadd.f32 %v2185, %v2297
          %2299 = vmatmul.f32.gmra.mxu0 %v2074
          %v2300 = vpop.f32.mrf.mxu0
          %v2301 = vadd.f32 %v2188, %v2300
          %2302 = vmatmul.f32.gmra.mxu0 %v2075
          %v2303 = vpop.f32.mrf.mxu0
          %v2304 = vadd.f32 %v2191, %v2303
          %2305 = vmatmul.f32.gmra.mxu0 %v2076
          %v2306 = vpop.f32.mrf.mxu0
          %v2307 = vadd.f32 %v2194, %v2306
          %2308 = vmatmul.f32.gmra.mxu0 %v2077
          %v2309 = vpop.f32.mrf.mxu0
          %v2310 = vadd.f32 %v2197, %v2309
          %2311 = vmatmul.f32.gmra.mxu0 %v2078
          %v2312 = vpop.f32.mrf.mxu0
          %v2313 = vadd.f32 %v2200, %v2312
          %2314 = vmatmul.f32.gmra.mxu0 %v2079
          %v2315 = vpop.f32.mrf.mxu0
          %v2316 = vadd.f32 %v2203, %v2315
          %2317 = vmatmul.f32.gmra.mxu0 %v2080
          %v2318 = vpop.f32.mrf.mxu0
          %v2319 = vadd.f32 %v2206, %v2318
          %2320 = vmatmul.f32.gmra.mxu0 %v2081
          %v2321 = vpop.f32.mrf.mxu0
          %v2322 = vadd.f32 %v2209, %v2321
          %2323 = vmatmul.f32.gmra.mxu0 %v2082
          %v2324 = vpop.f32.mrf.mxu0
          %v2325 = vadd.f32 %v2212, %v2324
          %2326 = vmatmul.f32.gmra.mxu0 %v2083
          %v2327 = vpop.f32.mrf.mxu0
          %v2328 = vadd.f32 %v2215, %v2327
          %2329 = vmatmul.f32.gmra.mxu0 %v2084
          %v2330 = vpop.f32.mrf.mxu0
          %v2331 = vadd.f32 %v2218, %v2330
          %2332 = vmatmul.f32.gmra.mxu0 %v2085
          %v2333 = vpop.f32.mrf.mxu0
          %v2334 = vadd.f32 %v2221, %v2333
          %2335 = vmatmul.f32.gmra.mxu0 %v2086
          %v2336 = vpop.f32.mrf.mxu0
          %v2337 = vadd.f32 %v2224, %v2336
          %2338 = vmatmul.f32.gmra.mxu0 %v2087
          %v2339 = vpop.f32.mrf.mxu0
          %v2340 = vadd.f32 %v2227, %v2339
          %2341 = vmatmul.f32.gmra.mxu0 %v2088
          %v2342 = vpop.f32.mrf.mxu0
          %v2343 = vadd.f32 %v2230, %v2342
          %2344 = vmatmul.f32.gmra.mxu0 %v2089
          %v2345 = vpop.f32.mrf.mxu0
          %v2346 = vadd.f32 %v2233, %v2345
          %2347 = vdwg.mxu0
          %v2348 = vld [vmem:[%s4 + $0x100] sm:$0xff]
          %v2349 = vld [vmem:[%s4 + $0x108] sm:$0xff]
          %v2350 = vld [vmem:[%s4 + $0x110] sm:$0xff]
          %v2351 = vld [vmem:[%s4 + $0x118] sm:$0xff]
          %v2352 = vld [vmem:[%s4 + $0x120] sm:$0xff]
          %v2353 = vld [vmem:[%s4 + $0x128] sm:$0xff]
          %v2354 = vld [vmem:[%s4 + $0x130] sm:$0xff]
          %v2355 = vld [vmem:[%s4 + $0x138] sm:$0xff]
          %v2356 = vld [vmem:[%s4 + $0x140] sm:$0xff]
          %v2357 = vld [vmem:[%s4 + $0x148] sm:$0xff]
          %v2358 = vld [vmem:[%s4 + $0x150] sm:$0xff]
          %v2359 = vld [vmem:[%s4 + $0x158] sm:$0xff]
          %v2360 = vld [vmem:[%s4 + $0x160] sm:$0xff]
          %v2361 = vld [vmem:[%s4 + $0x168] sm:$0xff]
          %v2362 = vld [vmem:[%s4 + $0x170] sm:$0xff]
          %v2363 = vld [vmem:[%s4 + $0x178] sm:$0xff]
          %2364 = vmatpush.msra.mxu0 %v2363
          %2365 = vmatpush.msra.mxu0 %v2362
          %2366 = vmatpush.msra.mxu0 %v2361
          %2367 = vmatpush.msra.mxu0 %v2360
          %2368 = vmatpush.msra.mxu0 %v2359
          %2369 = vmatpush.msra.mxu0 %v2358
          %2370 = vmatpush.msra.mxu0 %v2357
          %2371 = vmatpush.msra.mxu0 %v2356
          %2372 = vmatpush.msra.mxu0 %v2355
          %2373 = vmatpush.msra.mxu0 %v2354
          %2374 = vmatpush.msra.mxu0 %v2353
          %2375 = vmatpush.msra.mxu0 %v2352
          %2376 = vmatpush.msra.mxu0 %v2351
          %2377 = vmatpush.msra.mxu0 %v2350
          %2378 = vmatpush.msra.mxu0 %v2349
          %2379 = vmatpush.msra.mxu0 %v2348
          %2380 = vmatmul.f32.gmra.mxu0 %v1962
          %v2381 = vpop.f32.mrf.mxu0
          %v2382 = vadd.f32 0.0, %v2381
          %2383 = vmatmul.f32.gmra.mxu0 %v1963
          %v2384 = vpop.f32.mrf.mxu0
          %v2385 = vadd.f32 0.0, %v2384
          %2386 = vmatmul.f32.gmra.mxu0 %v1964
          %v2387 = vpop.f32.mrf.mxu0
          %v2388 = vadd.f32 0.0, %v2387
          %2389 = vmatmul.f32.gmra.mxu0 %v1965
          %v2390 = vpop.f32.mrf.mxu0
          %v2391 = vadd.f32 0.0, %v2390
          %2392 = vmatmul.f32.gmra.mxu0 %v1966
          %v2393 = vpop.f32.mrf.mxu0
          %v2394 = vadd.f32 0.0, %v2393
          %2395 = vmatmul.f32.gmra.mxu0 %v1967
          %v2396 = vpop.f32.mrf.mxu0
          %v2397 = vadd.f32 0.0, %v2396
          %2398 = vmatmul.f32.gmra.mxu0 %v1968
          %v2399 = vpop.f32.mrf.mxu0
          %v2400 = vadd.f32 0.0, %v2399
          %2401 = vmatmul.f32.gmra.mxu0 %v1969
          %v2402 = vpop.f32.mrf.mxu0
          %v2403 = vadd.f32 0.0, %v2402
          %2404 = vmatmul.f32.gmra.mxu0 %v1970
          %v2405 = vpop.f32.mrf.mxu0
          %v2406 = vadd.f32 0.0, %v2405
          %2407 = vmatmul.f32.gmra.mxu0 %v1971
          %v2408 = vpop.f32.mrf.mxu0
          %v2409 = vadd.f32 0.0, %v2408
          %2410 = vmatmul.f32.gmra.mxu0 %v1972
          %v2411 = vpop.f32.mrf.mxu0
          %v2412 = vadd.f32 0.0, %v2411
          %2413 = vmatmul.f32.gmra.mxu0 %v1973
          %v2414 = vpop.f32.mrf.mxu0
          %v2415 = vadd.f32 0.0, %v2414
          %2416 = vmatmul.f32.gmra.mxu0 %v1974
          %v2417 = vpop.f32.mrf.mxu0
          %v2418 = vadd.f32 0.0, %v2417
          %2419 = vmatmul.f32.gmra.mxu0 %v1975
          %v2420 = vpop.f32.mrf.mxu0
          %v2421 = vadd.f32 0.0, %v2420
          %2422 = vmatmul.f32.gmra.mxu0 %v1976
          %v2423 = vpop.f32.mrf.mxu0
          %v2424 = vadd.f32 0.0, %v2423
          %2425 = vmatmul.f32.gmra.mxu0 %v1977
          %v2426 = vpop.f32.mrf.mxu0
          %v2427 = vadd.f32 0.0, %v2426
          %2428 = vmatmul.f32.gmra.mxu0 %v1978
          %v2429 = vpop.f32.mrf.mxu0
          %v2430 = vadd.f32 0.0, %v2429
          %2431 = vmatmul.f32.gmra.mxu0 %v1979
          %v2432 = vpop.f32.mrf.mxu0
          %v2433 = vadd.f32 0.0, %v2432
          %2434 = vmatmul.f32.gmra.mxu0 %v1980
          %v2435 = vpop.f32.mrf.mxu0
          %v2436 = vadd.f32 0.0, %v2435
          %2437 = vmatmul.f32.gmra.mxu0 %v1981
          %v2438 = vpop.f32.mrf.mxu0
          %v2439 = vadd.f32 0.0, %v2438
          %2440 = vmatmul.f32.gmra.mxu0 %v1982
          %v2441 = vpop.f32.mrf.mxu0
          %v2442 = vadd.f32 0.0, %v2441
          %2443 = vmatmul.f32.gmra.mxu0 %v1983
          %v2444 = vpop.f32.mrf.mxu0
          %v2445 = vadd.f32 0.0, %v2444
          %2446 = vmatmul.f32.gmra.mxu0 %v1984
          %v2447 = vpop.f32.mrf.mxu0
          %v2448 = vadd.f32 0.0, %v2447
          %2449 = vmatmul.f32.gmra.mxu0 %v1985
          %v2450 = vpop.f32.mrf.mxu0
          %v2451 = vadd.f32 0.0, %v2450
          %2452 = vmatmul.f32.gmra.mxu0 %v1986
          %v2453 = vpop.f32.mrf.mxu0
          %v2454 = vadd.f32 0.0, %v2453
          %2455 = vmatmul.f32.gmra.mxu0 %v1987
          %v2456 = vpop.f32.mrf.mxu0
          %v2457 = vadd.f32 0.0, %v2456
          %2458 = vmatmul.f32.gmra.mxu0 %v1988
          %v2459 = vpop.f32.mrf.mxu0
          %v2460 = vadd.f32 0.0, %v2459
          %2461 = vmatmul.f32.gmra.mxu0 %v1989
          %v2462 = vpop.f32.mrf.mxu0
          %v2463 = vadd.f32 0.0, %v2462
          %2464 = vmatmul.f32.gmra.mxu0 %v1990
          %v2465 = vpop.f32.mrf.mxu0
          %v2466 = vadd.f32 0.0, %v2465
          %2467 = vmatmul.f32.gmra.mxu0 %v1991
          %v2468 = vpop.f32.mrf.mxu0
          %v2469 = vadd.f32 0.0, %v2468
          %2470 = vmatmul.f32.gmra.mxu0 %v1992
          %v2471 = vpop.f32.mrf.mxu0
          %v2472 = vadd.f32 0.0, %v2471
          %2473 = vmatmul.f32.gmra.mxu0 %v1993
          %v2474 = vpop.f32.mrf.mxu0
          %v2475 = vadd.f32 0.0, %v2474
          %2476 = vdwg.mxu0
          %v2477 = vadd.f32 %v2253, %v2382
          %v2478 = vadd.f32 %v2256, %v2385
          %v2479 = vadd.f32 %v2259, %v2388
          %v2480 = vadd.f32 %v2262, %v2391
          %v2481 = vadd.f32 %v2265, %v2394
          %v2482 = vadd.f32 %v2268, %v2397
          %v2483 = vadd.f32 %v2271, %v2400
          %v2484 = vadd.f32 %v2274, %v2403
          %v2485 = vadd.f32 %v2277, %v2406
          %v2486 = vadd.f32 %v2280, %v2409
          %v2487 = vadd.f32 %v2283, %v2412
          %v2488 = vadd.f32 %v2286, %v2415
          %v2489 = vadd.f32 %v2289, %v2418
          %v2490 = vadd.f32 %v2292, %v2421
          %v2491 = vadd.f32 %v2295, %v2424
          %v2492 = vadd.f32 %v2298, %v2427
          %v2493 = vadd.f32 %v2301, %v2430
          %v2494 = vadd.f32 %v2304, %v2433
          %v2495 = vadd.f32 %v2307, %v2436
          %v2496 = vadd.f32 %v2310, %v2439
          %v2497 = vadd.f32 %v2313, %v2442
          %v2498 = vadd.f32 %v2316, %v2445
          %v2499 = vadd.f32 %v2319, %v2448
          %v2500 = vadd.f32 %v2322, %v2451
          %v2501 = vadd.f32 %v2325, %v2454
          %v2502 = vadd.f32 %v2328, %v2457
          %v2503 = vadd.f32 %v2331, %v2460
          %v2504 = vadd.f32 %v2334, %v2463
          %v2505 = vadd.f32 %v2337, %v2466
          %v2506 = vadd.f32 %v2340, %v2469
          %v2507 = vadd.f32 %v2343, %v2472
          %v2508 = vadd.f32 %v2346, %v2475
          %2509 = vst [vmem:[%s524] sm:$0xff] %v2477
          %2510 = vst [vmem:[%s524 + $0x8] sm:$0xff] %v2478
          %2511 = vst [vmem:[%s524 + $0x10] sm:$0xff] %v2479
          %2512 = vst [vmem:[%s524 + $0x18] sm:$0xff] %v2480
          %2513 = vst [vmem:[%s524 + $0x20] sm:$0xff] %v2481
          %2514 = vst [vmem:[%s524 + $0x28] sm:$0xff] %v2482
          %2515 = vst [vmem:[%s524 + $0x30] sm:$0xff] %v2483
          %2516 = vst [vmem:[%s524 + $0x38] sm:$0xff] %v2484
          %2517 = vst [vmem:[%s524 + $0x40] sm:$0xff] %v2485
          %2518 = vst [vmem:[%s524 + $0x48] sm:$0xff] %v2486
          %2519 = vst [vmem:[%s524 + $0x50] sm:$0xff] %v2487
          %2520 = vst [vmem:[%s524 + $0x58] sm:$0xff] %v2488
          %2521 = vst [vmem:[%s524 + $0x60] sm:$0xff] %v2489
          %2522 = vst [vmem:[%s524 + $0x68] sm:$0xff] %v2490
          %2523 = vst [vmem:[%s524 + $0x70] sm:$0xff] %v2491
          %2524 = vst [vmem:[%s524 + $0x78] sm:$0xff] %v2492
          %2525 = vst [vmem:[%s524 + $0x80] sm:$0xff] %v2493
          %2526 = vst [vmem:[%s524 + $0x88] sm:$0xff] %v2494
          %2527 = vst [vmem:[%s524 + $0x90] sm:$0xff] %v2495
          %2528 = vst [vmem:[%s524 + $0x98] sm:$0xff] %v2496
          %2529 = vst [vmem:[%s524 + $0xa0] sm:$0xff] %v2497
          %2530 = vst [vmem:[%s524 + $0xa8] sm:$0xff] %v2498
          %2531 = vst [vmem:[%s524 + $0xb0] sm:$0xff] %v2499
          %2532 = vst [vmem:[%s524 + $0xb8] sm:$0xff] %v2500
          %2533 = vst [vmem:[%s524 + $0xc0] sm:$0xff] %v2501
          %2534 = vst [vmem:[%s524 + $0xc8] sm:$0xff] %v2502
          %2535 = vst [vmem:[%s524 + $0xd0] sm:$0xff] %v2503
          %2536 = vst [vmem:[%s524 + $0xd8] sm:$0xff] %v2504
          %2537 = vst [vmem:[%s524 + $0xe0] sm:$0xff] %v2505
          %2538 = vst [vmem:[%s524 + $0xe8] sm:$0xff] %v2506
          %2539 = vst [vmem:[%s524 + $0xf0] sm:$0xff] %v2507
          %2540 = vst [vmem:[%s524 + $0xf8] sm:$0xff] %v2508
        $region109: #{gnn_layer.1} parent=92 // pred_fallthru
          _
        %s2541 = smul.u32 32, %s20
        %p2542 = scmp.lt.s32.totalorder %s2541, 63
        %s2543 = scalar_select %p2542, %s2541, 63
        %s2544 = smul.addr %s2543, 8
        %s2545 = scalar_lea.vmem %s5, %s2544
        // Predicated region
        $region110: #{gnn_layer.1} parent=92 // pred_check
          %p2546 = pneg %p175
        $region111: #{gnn_layer.1} parent=92 // pred_check_branch
          %2548 = sbr.rel (%p2546) target = $region113
        $region112: #{gnn_layer.1} parent=92 // pred_region
          %s2549 = smul.u32 32, %s20
        $region113: #{gnn_layer.1} parent=92 // pred_fallthru
          _
      $region93: #{gnn_layer.1} parent=5 // pred_fallthru
        _
      %p2550 = scmp.le.s32.totalorder 2, %s11
      // Predicated region
      $region114: #{gnn_layer.1} parent=5 // pred_check
        %p2551 = pneg %p2550
      $region115: #{gnn_layer.1} parent=5 // pred_check_branch
        %2553 = sbr.rel (%p2551) target = $region117
      $region116: #{gnn_layer.1} parent=5 // pred_region
        %s2554 = ssub.s32 %s11, 2
        // Predicated region
        $region118: #{gnn_layer.1} parent=116 // pred_check
          %p2555 = pneg %p181
        $region119: #{gnn_layer.1} parent=116 // pred_check_branch
          %2557 = sbr.rel (%p2555) target = $region121
        $region120: #{gnn_layer.1} parent=116 // pred_region
          %s2558 = smul.u32 32, %s22
          %p2559 = scmp.lt.s32.totalorder %s2558, 63
          %s2560 = scalar_select %p2559, %s2558, 63
          %s2561 = smul.addr %s2560, 8
          %s2562 = scalar_lea.vmem %s5, %s2561
        $region121: #{gnn_layer.1} parent=116 // pred_fallthru
          _
      $region117: #{gnn_layer.1} parent=5 // pred_fallthru
        _
    $region6: #{gnn_layer.1} parent=1 // loop_footer
      %s15 = sadd.s32 1, %s11
    $region7: #{gnn_layer.1} parent=1 // loop_footer_branch
      %10 = sbr.rel target = $region3
    $region8: #{gnn_layer.1} parent=1 // loop_exit
      _

</llo_original>
